<compile_context>
chip_gen: v7x
topology: tpu7x:2x2x1
jax: 0.10.0
libtpu: 0.0.40
codegen_flags: <defaults>
</compile_context>

<pallas_src>
import functools

import numpy as np
import jax
import jax.numpy as jnp
from jax.experimental import pallas as pl
from jax.experimental.pallas import tpu as pltpu


def _round_up(x, m):
    return (x + m - 1) // m * m


def _mask_tiling(row_block, hw):
    """Lane-dense HW tile: multiple of 128; double-buffered bf16 streaming
    (2 inputs x 2 buffers x block) stays under ~12 MiB, safe on every
    generation's default scoped VMEM (v5e 16 MiB / v6e 32 / v7x 32-of-64)."""
    budget = 12 * 1024 * 1024
    cap = max(128, min(8192, (budget // (8 * row_block)) // 128 * 128))
    hw128 = _round_up(hw, 128)
    if hw128 <= cap:
        return hw128, hw128
    # largest tile <= cap whose padding waste is <= HW/8
    for t in range(cap, 127, -128):
        if _round_up(hw, t) - hw <= hw // 8:
            return t, _round_up(hw, t)
    return 128, _round_up(hw, 128)


def _fold128(v):
    """(R, k*128) -> (R, 128) by summing 128-lane groups.  Static, lane-aligned
    slices of a vreg-resident value + VALU adds; no cross-lane XLU work."""
    k = v.shape[1] // 128
    out = v[:, 0:128]
    for g in range(1, k):
        out = out + v[:, g * 128:(g + 1) * 128]
    return out


# ----------------------------------------------------------------------------
# Kernel 1 (fused, single block): weighted CE + class_error, cardinality error,
# and L1 / GIoU box losses.  All inputs are tiny; one launch does it all.
# ----------------------------------------------------------------------------
def _fused_scalar_kernel(logits_ref, tcls_ref, mmask_ref, tlen_ref,
                         sbox_ref, tbox_ref, bval_ref, o_ref,
                         *, num_classes, eos_coef):
    x = logits_ref[...]                      # [B, Q, C_PAD] f32 (pad = -1e30)
    t = tcls_ref[...]                        # [B, Q] int32
    msk = mmask_ref[...]                     # [B, Q] f32 (1 = matched)
    tlen = tlen_ref[...]                     # [B, 1] f32
    B, Q, CP = x.shape

    # ---- weighted cross entropy (== F.cross_entropy(..., weight=empty_weight))
    iota_c = jax.lax.broadcasted_iota(jnp.int32, (B, Q, CP), 2)
    onehot = (iota_c == t[:, :, None]).astype(jnp.float32)
    x_t = jnp.sum(x * onehot, axis=-1)                           # [B, Q]
    m = jnp.max(x, axis=-1)                                      # [B, Q]
    lse = m + jnp.log(jnp.sum(jnp.exp(x - m[:, :, None]), axis=-1))
    nll = lse - x_t
    w_t = jnp.where(t == num_classes, eos_coef, 1.0).astype(jnp.float32)
    loss_ce = jnp.sum(w_t * nll) / jnp.sum(w_t)

    # ---- strict first-index argmax (matches torch / jnp argmax tie-breaking)
    iota_f = iota_c.astype(jnp.float32)
    pred = jnp.min(jnp.where(x >= m[:, :, None], iota_f, float(CP)), axis=-1)

    # ---- class error (top-1 accuracy on matched queries)
    correct = jnp.sum(jnp.where((pred == t.astype(jnp.float32)) & (msk > 0.0),
                                1.0, 0.0))
    matched = jnp.maximum(jnp.sum(msk), 1.0)
    class_error = 100.0 - 100.0 * correct / matched

    # ---- cardinality error (argmax != no-object vs #gt, L1 mean)
    nonempty = jnp.where(pred != float(num_classes), 1.0, 0.0)   # [B, Q]
    card_pred = jnp.sum(nonempty, axis=1, keepdims=True)         # [B, 1]
    card_err = jnp.mean(jnp.abs(card_pred - tlen))

    # ---- boxes: [4, N_PAD] with matched pairs on the lane axis
    s = sbox_ref[...]                        # [4, N_PAD] cxcywh (pads = dummy)
    tb = tbox_ref[...]                       # [4, N_PAD]
    v = bval_ref[...]                        # [1, N_PAD] validity

    l1_sum = jnp.sum(jnp.abs(s - tb) * v)

    def xyxy(b):
        cx, cy, w, h = b[0:1, :], b[1:2, :], b[2:3, :], b[3:4, :]
        return cx - 0.5 * w, cy - 0.5 * h, cx + 0.5 * w, cy + 0.5 * h

    sx0, sy0, sx1, sy1 = xyxy(s)
    tx0, ty0, tx1, ty1 = xyxy(tb)
    area_s = (sx1 - sx0) * (sy1 - sy0)
    area_t = (tx1 - tx0) * (ty1 - ty0)
    iw = jnp.maximum(jnp.minimum(sx1, tx1) - jnp.maximum(sx0, tx0), 0.0)
    ih = jnp.maximum(jnp.minimum(sy1, ty1) - jnp.maximum(sy0, ty0), 0.0)
    inter = iw * ih
    union = area_s + area_t - inter
    iou = inter / union
    ew = jnp.maximum(sx1, tx1) - jnp.minimum(sx0, tx0)
    eh = jnp.maximum(sy1, ty1) - jnp.minimum(sy0, ty0)
    area_e = ew * eh
    giou = iou - (area_e - union) / area_e
    giou_sum = jnp.sum((1.0 - giou) * v)

    o_ref[0] = loss_ce
    o_ref[1] = class_error
    o_ref[2] = card_err
    o_ref[3] = l1_sum
    o_ref[4] = giou_sum


def _fused_scalar_losses(logits_pad, target_classes, matched_mask, tgt_lengths,
                         src_boxes_t, tgt_boxes_t, box_valid,
                         num_classes, eos_coef):
    return pl.pallas_call(
        functools.partial(_fused_scalar_kernel,
                          num_classes=num_classes, eos_coef=eos_coef),
        out_shape=jax.ShapeDtypeStruct((5,), jnp.float32),
        in_specs=[pl.BlockSpec(memory_space=pltpu.MemorySpace.VMEM)] * 7,
        out_specs=pl.BlockSpec(memory_space=pltpu.MemorySpace.SMEM),
    )(logits_pad, target_classes, matched_mask, tgt_lengths,
      src_boxes_t, tgt_boxes_t, box_valid)


# ----------------------------------------------------------------------------
# Kernel 2 (tiled rows x HW): sigmoid focal + dice partial sums per mask row.
# bf16 streaming, lane-dense (row, 128) f32 accumulators, pl.when init/finalize.
# Row padding / garbage rows are masked in the wrapper on the per-row outputs.
# ----------------------------------------------------------------------------
def _masks_kernel(src_ref, tgt_ref, focal_ref, dice_ref,
                  f_acc, i_acc, p_acc, t_acc, *, alpha, eps):
    h = pl.program_id(1)

    @pl.when(h == 0)
    def _init():
        f_acc[...] = jnp.zeros_like(f_acc)
        i_acc[...] = jnp.zeros_like(i_acc)
        p_acc[...] = jnp.zeros_like(p_acc)
        t_acc[...] = jnp.zeros_like(t_acc)

    x = src_ref[...].astype(jnp.float32)          # [RB, HW_TILE] mask logits
    t = tgt_ref[...].astype(jnp.float32)          # [RB, HW_TILE] binary target

    # sigmoid / softplus sharing one exp (EUP) + one approx reciprocal (EUP)
    e = jnp.exp(-jnp.abs(x))                      # exp(-|x|)
    one_pe = 1.0 + e
    sp = jnp.maximum(x, 0.0) + jnp.log(one_pe)    # softplus(x)
    p = jnp.where(x >= 0.0, 1.0, e) * pl.reciprocal(one_pe, approx=True)

    ce = sp - t * x                               # BCE-with-logits identity
    d = t - p                                     # |t-p| == 1 - p_t for t in {0,1}
    alpha_t = (1.0 - alpha) + (2.0 * alpha - 1.0) * t
    fl = alpha_t * ce * (d * d)                   # gamma == 2 -> explicit square

    # lane-group folding (pure VALU adds) into lane-dense f32 accumulators
    f_acc[...] += _fold128(fl)
    i_acc[...] += _fold128(p * t)
    p_acc[...] += _fold128(p)
    t_acc[...] += _fold128(t)

    @pl.when(h == pl.num_programs(1) - 1)
    def _finalize():
        # single cross-lane reduce + lane-sparse stores, once per row block
        focal_ref[...] = jnp.sum(f_acc[...], axis=1, keepdims=True)
        inter = jnp.sum(i_acc[...], axis=1, keepdims=True)
        psum = jnp.sum(p_acc[...], axis=1, keepdims=True)
        tsum = jnp.sum(t_acc[...], axis=1, keepdims=True)
        dice_ref[...] = 1.0 - (2.0 * inter + eps) / (psum + tsum + eps)


def _masks_partial_sums(src_m, tgt_m, *, row_block, hw_tile,
                        alpha=0.25, eps=1e-6):
    n_pad, hw_pad = src_m.shape
    grid = (n_pad // row_block, hw_pad // hw_tile)
    kernel = functools.partial(_masks_kernel, alpha=alpha, eps=eps)
    return pl.pallas_call(
        kernel,
        out_shape=(jax.ShapeDtypeStruct((n_pad, 1), jnp.float32),
                   jax.ShapeDtypeStruct((n_pad, 1), jnp.float32)),
        grid=grid,
        in_specs=[
            pl.BlockSpec((row_block, hw_tile), lambda r, h: (r, h)),
            pl.BlockSpec((row_block, hw_tile), lambda r, h: (r, h)),
        ],
        out_specs=(pl.BlockSpec((row_block, 1), lambda r, h: (r, 0)),
                   pl.BlockSpec((row_block, 1), lambda r, h: (r, 0))),
        scratch_shapes=[pltpu.VMEM((row_block, 128), jnp.float32)
                        for _ in range(4)],
        compiler_params=pltpu.CompilerParams(
            dimension_semantics=("parallel", "arbitrary"),
            vmem_limit_bytes=32 * 1024 * 1024),
    )(src_m, tgt_m)


# ----------------------------------------------------------------------------
# SetCriterion-like wrapper
# ----------------------------------------------------------------------------
class SetCriterionPallas:
    def __init__(self, num_classes, eos_coef=0.1,
                 losses=("labels", "cardinality", "boxes", "masks")):
        self.num_classes = int(num_classes)
        self.eos_coef = float(eos_coef)
        self.losses = tuple(losses)
        self._loss_fn = jax.jit(self._compute_losses)

    # ---------------- jitted device-side computation (fixed shapes) ----------
    def _compute_losses(self, pred_logits, pred_boxes, pred_masks,
                        batch_idx, src_idx, labels, tgt_boxes, tgt_masks,
                        tgt_lengths, n_valid, num_boxes):
        B, Q, C1 = pred_logits.shape
        N_PAD = batch_idx.shape[0]
        C_PAD = _round_up(C1, 128)
        H, W = tgt_masks.shape[-2], tgt_masks.shape[-1]
        HW = H * W

        inv_nb = 1.0 / num_boxes.astype(jnp.float32)
        valid = jnp.arange(N_PAD, dtype=jnp.int32) < n_valid.astype(jnp.int32)

        # dense target classes + matched mask (padded rows carry src_idx == Q,
        # i.e. out of bounds -> dropped by the scatter)
        target_classes = jnp.full((B, Q), self.num_classes, jnp.int32)
        target_classes = target_classes.at[batch_idx, src_idx].set(
            labels.astype(jnp.int32), mode="drop")
        matched_mask = jnp.zeros((B, Q), jnp.float32)
        matched_mask = matched_mask.at[batch_idx, src_idx].set(1.0, mode="drop")

        # lane-dense logits: pad class dim to 128 with -1e30 (no effect on LSE)
        logits = pred_logits.astype(jnp.float32)
        if C_PAD != C1:
            logits = jnp.pad(logits, ((0, 0), (0, 0), (0, C_PAD - C1)),
                             constant_values=-1e30)

        # matched boxes -> [4, N_PAD] (pairs on the lane axis); pads get a
        # dummy unit box so IoU/GIoU never divides by zero, then get masked.
        dummy = jnp.array([0.5, 0.5, 1.0, 1.0], jnp.float32)
        src_b = pred_boxes[batch_idx, src_idx].astype(jnp.float32)
        src_b = jnp.where(valid[:, None], src_b, dummy)
        tgt_b = jnp.where(valid[:, None], tgt_boxes.astype(jnp.float32), dummy)
        box_valid = valid.astype(jnp.float32)[None, :]           # [1, N_PAD]

        losses = {}
        if any(l in self.losses for l in ("labels", "cardinality", "boxes")):
            out = _fused_scalar_losses(
                logits, target_classes, matched_mask,
                tgt_lengths.reshape(B, 1).astype(jnp.float32),
                src_b.T, tgt_b.T, box_valid,
                self.num_classes, self.eos_coef)
            if "labels" in self.losses:
                losses["loss_ce"] = out[0]
                losses["class_error"] = out[1]
            if "cardinality" in self.losses:
                losses["cardinality_error"] = out[2]
            if "boxes" in self.losses:
                losses["loss_bbox"] = out[3] * inv_nb
                losses["loss_giou"] = out[4] * inv_nb

        if "masks" in self.losses:
            row_block = N_PAD // 2            # 2 row blocks -> one per v7x core
            hw_tile, hw_pad = _mask_tiling(row_block, HW)
            # bf16 streaming halves HBM traffic of the only heavy kernel;
            # gather + cast + pad are left to a single XLA fusion pass.
            src_m = pred_masks[batch_idx, src_idx].reshape(N_PAD, HW)
            src_m = src_m.astype(jnp.bfloat16)
            tgt_m = tgt_masks.reshape(N_PAD, HW).astype(jnp.bfloat16)
            if hw_pad != HW:
                # pad logits with a large negative (sigmoid ~ 0, softplus ~ 0)
                # and targets with 0 -> padded lanes contribute ~0, so no
                # per-element masking is needed inside the hot loop.
                src_m = jnp.pad(src_m, ((0, 0), (0, hw_pad - HW)),
                                constant_values=-1e4)
                tgt_m = jnp.pad(tgt_m, ((0, 0), (0, hw_pad - HW)))
            focal_rows, dice_rows = _masks_partial_sums(
                src_m, tgt_m, row_block=row_block, hw_tile=hw_tile)
            # row validity applied once here (garbage clamped-gather rows and
            # padded rows are zeroed before the final sums)
            valid_col = valid.astype(jnp.float32)[:, None]       # [N_PAD, 1]
            losses["loss_mask"] = jnp.maximum(
                jnp.sum(focal_rows * valid_col) * (1.0 / HW) * inv_nb, 1e-6)
            losses["loss_dice"] = jnp.sum(dice_rows * valid_col) * inv_nb
        return losses

    # ---------------- host-side glue (numpy, no per-image device ops) --------
    def __call__(self, outputs, targets, indices):
        pred_logits = outputs["pred_logits"]
        pred_boxes = outputs["pred_boxes"]
        pred_masks = outputs["pred_masks"]
        B, Q, _ = pred_logits.shape

        src_list = [np.asarray(s, np.int32) for s, _ in indices]
        tgt_list = [np.asarray(t, np.int32) for _, t in indices]
        batch_idx = np.concatenate(
            [np.full(len(s), b, np.int32) for b, s in enumerate(src_list)])
        src_idx = np.concatenate(src_list).astype(np.int32)
        n = int(src_idx.shape[0])

        # bucket the matched count (multiples of 128) -> bounded recompiles and
        # the heavy mask kernel never streams more rows than needed.
        n_pad = max(128, _round_up(n, 128))

        labels_cat = np.concatenate(
            [np.asarray(targets[b]["labels"])[tgt_list[b]] for b in range(B)]
        ).astype(np.int32)
        boxes_cat = np.concatenate(
            [np.asarray(targets[b]["boxes"], np.float32)[tgt_list[b]]
             for b in range(B)], axis=0)
        masks_cat = np.concatenate(
            [np.asarray(targets[b]["masks"], np.float32)[tgt_list[b]]
             for b in range(B)], axis=0)
        tgt_lengths = np.array(
            [int(np.asarray(targets[b]["labels"]).shape[0]) for b in range(B)],
            np.float32)
        num_boxes = float(max(int(tgt_lengths.sum()), 1))

        pad = n_pad - n
        batch_idx_p = np.pad(batch_idx, (0, pad))
        src_idx_p = np.pad(src_idx, (0, pad), constant_values=Q)  # OOB -> drop
        labels_p = np.pad(labels_cat, (0, pad))
        boxes_p = np.pad(boxes_cat, ((0, pad), (0, 0)))
        masks_p = np.pad(masks_cat, ((0, pad), (0, 0), (0, 0)))

        return self._loss_fn(pred_logits, pred_boxes, pred_masks,
                             jnp.asarray(batch_idx_p), jnp.asarray(src_idx_p),
                             jnp.asarray(labels_p), jnp.asarray(boxes_p),
                             jnp.asarray(masks_p), jnp.asarray(tgt_lengths),
                             jnp.asarray(n, jnp.int32),
                             jnp.asarray(num_boxes, jnp.float32))


# ----------------------------------------------------------------------------
# Pure-JAX reference (mirrors the PyTorch SetCriterion math) for verification.
# ----------------------------------------------------------------------------
def _reference_losses(outputs, targets, indices, num_classes, eos_coef):
    logits = outputs["pred_logits"].astype(jnp.float32)
    boxes = outputs["pred_boxes"].astype(jnp.float32)
    masks = outputs["pred_masks"].astype(jnp.float32)
    B, Q, C1 = logits.shape
    H, W = masks.shape[-2], masks.shape[-1]
    empty_weight = jnp.ones((C1,), jnp.float32).at[-1].set(eos_coef)
    num_boxes = max(sum(int(t["labels"].shape[0]) for t in targets), 1)

    target_classes = jnp.full((B, Q), num_classes, jnp.int32)
    m_log, m_lab, s_box, t_box, s_msk, t_msk, t_len = [], [], [], [], [], [], []
    for b, (si, ti) in enumerate(indices):
        lab = targets[b]["labels"][ti].astype(jnp.int32)
        target_classes = target_classes.at[b, si].set(lab)
        m_log.append(logits[b, si]); m_lab.append(lab)
        s_box.append(boxes[b, si]); t_box.append(targets[b]["boxes"][ti])
        s_msk.append(masks[b, si]); t_msk.append(targets[b]["masks"][ti])
        t_len.append(targets[b]["labels"].shape[0])
    m_log = jnp.concatenate(m_log); m_lab = jnp.concatenate(m_lab)
    s_box = jnp.concatenate(s_box); t_box = jnp.concatenate(t_box)
    s_msk = jnp.concatenate(s_msk).reshape(-1, H * W)
    t_msk = jnp.concatenate(t_msk).reshape(-1, H * W).astype(jnp.float32)
    t_len = jnp.asarray(t_len, jnp.float32)

    logp = jax.nn.log_softmax(logits, axis=-1)
    nll = -jnp.take_along_axis(logp, target_classes[..., None], axis=-1)[..., 0]
    w_t = empty_weight[target_classes]
    loss_ce = jnp.sum(w_t * nll) / jnp.sum(w_t)
    acc = jnp.mean((jnp.argmax(m_log, -1) == m_lab).astype(jnp.float32))
    class_error = 100.0 - 100.0 * acc
    card_pred = jnp.sum((jnp.argmax(logits, -1) != C1 - 1).astype(jnp.float32), 1)
    card_err = jnp.mean(jnp.abs(card_pred - t_len))

    loss_bbox = jnp.sum(jnp.abs(s_box - t_box)) / num_boxes

    def xyxy(bx):
        cx, cy, w, h = bx[:, 0], bx[:, 1], bx[:, 2], bx[:, 3]
        return cx - 0.5 * w, cy - 0.5 * h, cx + 0.5 * w, cy + 0.5 * h
    sx0, sy0, sx1, sy1 = xyxy(s_box)
    tx0, ty0, tx1, ty1 = xyxy(t_box)
    a_s = (sx1 - sx0) * (sy1 - sy0); a_t = (tx1 - tx0) * (ty1 - ty0)
    iw = jnp.maximum(jnp.minimum(sx1, tx1) - jnp.maximum(sx0, tx0), 0.0)
    ih = jnp.maximum(jnp.minimum(sy1, ty1) - jnp.maximum(sy0, ty0), 0.0)
    inter = iw * ih; union = a_s + a_t - inter
    iou = inter / union
    ew = jnp.maximum(sx1, tx1) - jnp.minimum(sx0, tx0)
    eh = jnp.maximum(sy1, ty1) - jnp.minimum(sy0, ty0)
    giou = iou - (ew * eh - union) / (ew * eh)
    loss_giou = jnp.sum(1.0 - giou) / num_boxes

    p = jax.nn.sigmoid(s_msk)
    ce = -(t_msk * jnp.log(p) + (1.0 - t_msk) * jnp.log(1.0 - p))
    p_t = p * t_msk + (1.0 - p) * (1.0 - t_msk)
    fl = (0.25 * t_msk + 0.75 * (1.0 - t_msk)) * ce * (1.0 - p_t) ** 2
    loss_mask = jnp.maximum(jnp.sum(jnp.mean(fl, axis=1)) / num_boxes, 1e-6)
    i_m = jnp.sum(p * t_msk, axis=1)
    c_m = jnp.sum(p, axis=1) + jnp.sum(t_msk, axis=1)
    loss_dice = jnp.sum(1.0 - (2.0 * i_m + 1e-6) / (c_m + 1e-6)) / num_boxes

    return {"loss_ce": loss_ce, "class_error": class_error,
            "cardinality_error": card_err, "loss_bbox": loss_bbox,
            "loss_giou": loss_giou, "loss_mask": loss_mask,
            "loss_dice": loss_dice}


# ----------------------------------------------------------------------------
if __name__ == "__main__":
    key = jax.random.PRNGKey(0)
    k = jax.random.split(key, 8)

    B, Q, num_classes, H, W = 2, 8, 4, 16, 16
    n_tgt = 3  # ground-truth boxes per image

    outputs = {
        "pred_logits": jax.random.normal(k[0], (B, Q, num_classes + 1), jnp.float32),
        "pred_boxes": jax.nn.sigmoid(jax.random.normal(k[1], (B, Q, 4), jnp.float32)),
        "pred_masks": jax.random.normal(k[2], (B, Q, H, W), jnp.float32),
    }

    targets = []
    for b in range(B):
        kb = jax.random.split(k[3 + b], 4)
        labels = jax.random.randint(kb[0], (n_tgt,), 0, num_classes, jnp.int32)
        centers = jax.random.uniform(kb[1], (n_tgt, 2), minval=0.25, maxval=0.75)
        sizes = jax.random.uniform(kb[2], (n_tgt, 2), minval=0.1, maxval=0.3)
        boxes = jnp.concatenate([centers, sizes], axis=-1).astype(jnp.float32)
        masks = (jax.random.uniform(kb[3], (n_tgt, H, W)) > 0.5).astype(jnp.float32)
        targets.append({"labels": labels, "boxes": boxes, "masks": masks})

    # deterministic matcher result: (src query indices, tgt box indices) per image
    indices = [
        (jnp.array([0, 2, 4], jnp.int32), jnp.array([0, 1, 2], jnp.int32)),
        (jnp.array([1, 3, 5], jnp.int32), jnp.array([0, 1, 2], jnp.int32)),
    ]

    criterion = SetCriterionPallas(num_classes=num_classes, eos_coef=0.1,
                                   losses=("labels", "cardinality", "boxes", "masks"))
    losses = criterion(outputs, targets, indices)
    losses = jax.block_until_ready(losses)

    ref = _reference_losses(outputs, targets, indices, num_classes, 0.1)
    ok = True
    for name in sorted(ref):
        a = float(losses[name])
        b = float(ref[name])
        if not abs(a - b) <= 2e-3 + 3e-2 * abs(b):
            ok = False
            print(f"MISMATCH {name}: pallas={a:.6f} ref={b:.6f}")
    if ok:
        print("KERNEL_OK")
</pallas_src>

<mosaic_0001>
module attributes {stable_mosaic.version = 11 : i64} {
  func.func @_fused_scalar_kernel(%arg0: memref<2x8x128xf32, #tpu.memory_space<vmem>>, %arg1: memref<2x8xi32, #tpu.memory_space<vmem>>, %arg2: memref<2x8xf32, #tpu.memory_space<vmem>>, %arg3: memref<2x1xf32, #tpu.memory_space<vmem>>, %arg4: memref<4x128xf32, #tpu.memory_space<vmem>>, %arg5: memref<4x128xf32, #tpu.memory_space<vmem>>, %arg6: memref<1x128xf32, #tpu.memory_space<vmem>>, %arg7: memref<5xf32, #tpu.memory_space<smem>>) attributes {dimension_semantics = [], scalar_prefetch = 0 : i64, scratch_operands = 0 : i64, tpu.core_type = #tpu.core_type<tc>} {
    %c0 = arith.constant 0 : index
    %c0_0 = arith.constant 0 : index
    %c0_1 = arith.constant 0 : index
    %0 = vector.load %arg0[%c0, %c0_0, %c0_1] : memref<2x8x128xf32, #tpu.memory_space<vmem>>, vector<2x8x128xf32>
    %c0_2 = arith.constant 0 : index
    %c0_3 = arith.constant 0 : index
    %1 = vector.load %arg1[%c0_2, %c0_3] : memref<2x8xi32, #tpu.memory_space<vmem>>, vector<2x8xi32>
    %c0_4 = arith.constant 0 : index
    %c0_5 = arith.constant 0 : index
    %2 = vector.load %arg2[%c0_4, %c0_5] : memref<2x8xf32, #tpu.memory_space<vmem>>, vector<2x8xf32>
    %c0_6 = arith.constant 0 : index
    %c0_7 = arith.constant 0 : index
    %3 = vector.load %arg3[%c0_6, %c0_7] : memref<2x1xf32, #tpu.memory_space<vmem>>, vector<2x1xf32>
    %4 = tpu.iota {dimensions = array<i32: 2>} : vector<2x8x128xi32>
    %5 = vector.shape_cast %1 : vector<2x8xi32> to vector<2x8x1xi32>
    %6 = vector.broadcast %5 : vector<2x8x1xi32> to vector<2x8x128xi32>
    %7 = arith.cmpi eq, %4, %6 : vector<2x8x128xi32>
    %8 = arith.extui %7 : vector<2x8x128xi1> to vector<2x8x128xi32>
    %9 = arith.sitofp %8 : vector<2x8x128xi32> to vector<2x8x128xf32>
    %10 = arith.mulf %0, %9 : vector<2x8x128xf32>
    %cst = arith.constant dense<0.000000e+00> : vector<2x8xf32>
    %11 = vector.multi_reduction <add>, %10, %cst [2] : vector<2x8x128xf32> to vector<2x8xf32>
    %cst_8 = arith.constant dense<0xFF800000> : vector<2x8xf32>
    %12 = vector.multi_reduction <maximumf>, %0, %cst_8 [2] : vector<2x8x128xf32> to vector<2x8xf32>
    %13 = vector.shape_cast %12 : vector<2x8xf32> to vector<2x8x1xf32>
    %14 = vector.broadcast %13 : vector<2x8x1xf32> to vector<2x8x128xf32>
    %15 = arith.subf %0, %14 : vector<2x8x128xf32>
    %16 = math.exp %15 : vector<2x8x128xf32>
    %cst_9 = arith.constant dense<0.000000e+00> : vector<2x8xf32>
    %17 = vector.multi_reduction <add>, %16, %cst_9 [2] : vector<2x8x128xf32> to vector<2x8xf32>
    %18 = math.log %17 : vector<2x8xf32>
    %19 = arith.addf %12, %18 : vector<2x8xf32>
    %20 = arith.subf %19, %11 : vector<2x8xf32>
    %c4_i32 = arith.constant 4 : i32
    %21 = vector.broadcast %c4_i32 : i32 to vector<2x8xi32>
    %22 = arith.cmpi eq, %1, %21 : vector<2x8xi32>
    %cst_10 = arith.constant 1.000000e-01 : f32
    %cst_11 = arith.constant 1.000000e+00 : f32
    %23 = vector.broadcast %cst_10 : f32 to vector<2x8xf32>
    %24 = vector.broadcast %cst_11 : f32 to vector<2x8xf32>
    %25 = arith.select %22, %23, %24 : vector<2x8xi1>, vector<2x8xf32>
    %26 = arith.mulf %25, %20 : vector<2x8xf32>
    %27 = vector.shape_cast %26 : vector<2x8xf32> to vector<1x2x8xf32>
    %cst_12 = arith.constant dense<0.000000e+00> : vector<1xf32>
    %28 = vector.multi_reduction <add>, %27, %cst_12 [1, 2] : vector<1x2x8xf32> to vector<1xf32>
    %29 = vector.shape_cast %28 : vector<1xf32> to vector<1x1x1xf32>
    %30 = vector.extract %29[0, 0, 0] : f32 from vector<1x1x1xf32>
    %31 = vector.shape_cast %25 : vector<2x8xf32> to vector<1x2x8xf32>
    %cst_13 = arith.constant dense<0.000000e+00> : vector<1xf32>
    %32 = vector.multi_reduction <add>, %31, %cst_13 [1, 2] : vector<1x2x8xf32> to vector<1xf32>
    %33 = vector.shape_cast %32 : vector<1xf32> to vector<1x1x1xf32>
    %34 = vector.extract %33[0, 0, 0] : f32 from vector<1x1x1xf32>
    %35 = arith.divf %30, %34 : f32
    %36 = arith.sitofp %4 : vector<2x8x128xi32> to vector<2x8x128xf32>
    %37 = vector.shape_cast %12 : vector<2x8xf32> to vector<2x8x1xf32>
    %38 = vector.broadcast %37 : vector<2x8x1xf32> to vector<2x8x128xf32>
    %39 = arith.cmpf oge, %0, %38 : vector<2x8x128xf32>
    %cst_14 = arith.constant 1.280000e+02 : f32
    %40 = vector.broadcast %cst_14 : f32 to vector<2x8x128xf32>
    %41 = arith.select %39, %36, %40 : vector<2x8x128xi1>, vector<2x8x128xf32>
    %cst_15 = arith.constant dense<0x7F800000> : vector<2x8xf32>
    %42 = vector.multi_reduction <minimumf>, %41, %cst_15 [2] : vector<2x8x128xf32> to vector<2x8xf32>
    %43 = arith.sitofp %1 : vector<2x8xi32> to vector<2x8xf32>
    %44 = arith.cmpf oeq, %42, %43 : vector<2x8xf32>
    %cst_16 = arith.constant 0.000000e+00 : f32
    %45 = vector.broadcast %cst_16 : f32 to vector<2x8xf32>
    %46 = arith.cmpf ogt, %2, %45 : vector<2x8xf32>
    %47 = arith.andi %44, %46 : vector<2x8xi1>
    %cst_17 = arith.constant 1.000000e+00 : f32
    %cst_18 = arith.constant 0.000000e+00 : f32
    %48 = vector.broadcast %cst_17 : f32 to vector<2x8xf32>
    %49 = vector.broadcast %cst_18 : f32 to vector<2x8xf32>
    %50 = arith.select %47, %48, %49 : vector<2x8xi1>, vector<2x8xf32>
    %51 = vector.shape_cast %50 : vector<2x8xf32> to vector<1x2x8xf32>
    %cst_19 = arith.constant dense<0.000000e+00> : vector<1xf32>
    %52 = vector.multi_reduction <add>, %51, %cst_19 [1, 2] : vector<1x2x8xf32> to vector<1xf32>
    %53 = vector.shape_cast %52 : vector<1xf32> to vector<1x1x1xf32>
    %54 = vector.extract %53[0, 0, 0] : f32 from vector<1x1x1xf32>
    %55 = vector.shape_cast %2 : vector<2x8xf32> to vector<1x2x8xf32>
    %cst_20 = arith.constant dense<0.000000e+00> : vector<1xf32>
    %56 = vector.multi_reduction <add>, %55, %cst_20 [1, 2] : vector<1x2x8xf32> to vector<1xf32>
    %57 = vector.shape_cast %56 : vector<1xf32> to vector<1x1x1xf32>
    %58 = vector.extract %57[0, 0, 0] : f32 from vector<1x1x1xf32>
    %cst_21 = arith.constant 1.000000e+00 : f32
    %59 = arith.maximumf %58, %cst_21 : f32
    %cst_22 = arith.constant 1.000000e+02 : f32
    %60 = arith.mulf %cst_22, %54 : f32
    %61 = arith.divf %60, %59 : f32
    %cst_23 = arith.constant 1.000000e+02 : f32
    %62 = arith.subf %cst_23, %61 : f32
    %cst_24 = arith.constant 4.000000e+00 : f32
    %63 = vector.broadcast %cst_24 : f32 to vector<2x8xf32>
    %64 = arith.cmpf one, %42, %63 : vector<2x8xf32>
    %cst_25 = arith.constant 1.000000e+00 : f32
    %cst_26 = arith.constant 0.000000e+00 : f32
    %65 = vector.broadcast %cst_25 : f32 to vector<2x8xf32>
    %66 = vector.broadcast %cst_26 : f32 to vector<2x8xf32>
    %67 = arith.select %64, %65, %66 : vector<2x8xi1>, vector<2x8xf32>
    %cst_27 = arith.constant dense<0.000000e+00> : vector<2xf32>
    %68 = vector.multi_reduction <add>, %67, %cst_27 [1] : vector<2x8xf32> to vector<2xf32>
    %69 = vector.shape_cast %68 : vector<2xf32> to vector<2x1xf32>
    %70 = arith.subf %69, %3 : vector<2x1xf32>
    %71 = math.absf %70 : vector<2x1xf32>
    %72 = vector.shape_cast %71 : vector<2x1xf32> to vector<1x2x1xf32>
    %cst_28 = arith.constant dense<0.000000e+00> : vector<1xf32>
    %73 = vector.multi_reduction <add>, %72, %cst_28 [1, 2] : vector<1x2x1xf32> to vector<1xf32>
    %74 = vector.shape_cast %73 : vector<1xf32> to vector<1x1x1xf32>
    %75 = vector.extract %74[0, 0, 0] : f32 from vector<1x1x1xf32>
    %cst_29 = arith.constant 2.000000e+00 : f32
    %76 = arith.divf %75, %cst_29 : f32
    %c0_30 = arith.constant 0 : index
    %c0_31 = arith.constant 0 : index
    %77 = vector.load %arg4[%c0_30, %c0_31] : memref<4x128xf32, #tpu.memory_space<vmem>>, vector<4x128xf32>
    %c0_32 = arith.constant 0 : index
    %c0_33 = arith.constant 0 : index
    %78 = vector.load %arg5[%c0_32, %c0_33] : memref<4x128xf32, #tpu.memory_space<vmem>>, vector<4x128xf32>
    %c0_34 = arith.constant 0 : index
    %c0_35 = arith.constant 0 : index
    %79 = vector.load %arg6[%c0_34, %c0_35] : memref<1x128xf32, #tpu.memory_space<vmem>>, vector<1x128xf32>
    %80 = arith.subf %77, %78 : vector<4x128xf32>
    %81 = math.absf %80 : vector<4x128xf32>
    %82 = vector.broadcast %79 : vector<1x128xf32> to vector<4x128xf32>
    %83 = arith.mulf %81, %82 : vector<4x128xf32>
    %84 = vector.shape_cast %83 : vector<4x128xf32> to vector<1x4x128xf32>
    %cst_36 = arith.constant dense<0.000000e+00> : vector<1xf32>
    %85 = vector.multi_reduction <add>, %84, %cst_36 [1, 2] : vector<1x4x128xf32> to vector<1xf32>
    %86 = vector.shape_cast %85 : vector<1xf32> to vector<1x1x1xf32>
    %87 = vector.extract %86[0, 0, 0] : f32 from vector<1x1x1xf32>
    %88 = vector.extract_strided_slice %77 {offsets = [0, 0], sizes = [1, 128], strides = [1, 1]} : vector<4x128xf32> to vector<1x128xf32>
    %89 = vector.extract_strided_slice %77 {offsets = [1, 0], sizes = [1, 128], strides = [1, 1]} : vector<4x128xf32> to vector<1x128xf32>
    %90 = vector.extract_strided_slice %77 {offsets = [2, 0], sizes = [1, 128], strides = [1, 1]} : vector<4x128xf32> to vector<1x128xf32>
    %91 = vector.extract_strided_slice %77 {offsets = [3, 0], sizes = [1, 128], strides = [1, 1]} : vector<4x128xf32> to vector<1x128xf32>
    %cst_37 = arith.constant 5.000000e-01 : f32
    %92 = vector.broadcast %cst_37 : f32 to vector<1x128xf32>
    %93 = arith.mulf %92, %90 : vector<1x128xf32>
    %94 = arith.subf %88, %93 : vector<1x128xf32>
    %cst_38 = arith.constant 5.000000e-01 : f32
    %95 = vector.broadcast %cst_38 : f32 to vector<1x128xf32>
    %96 = arith.mulf %95, %91 : vector<1x128xf32>
    %97 = arith.subf %89, %96 : vector<1x128xf32>
    %cst_39 = arith.constant 5.000000e-01 : f32
    %98 = vector.broadcast %cst_39 : f32 to vector<1x128xf32>
    %99 = arith.mulf %98, %90 : vector<1x128xf32>
    %100 = arith.addf %88, %99 : vector<1x128xf32>
    %cst_40 = arith.constant 5.000000e-01 : f32
    %101 = vector.broadcast %cst_40 : f32 to vector<1x128xf32>
    %102 = arith.mulf %101, %91 : vector<1x128xf32>
    %103 = arith.addf %89, %102 : vector<1x128xf32>
    %104 = vector.extract_strided_slice %78 {offsets = [0, 0], sizes = [1, 128], strides = [1, 1]} : vector<4x128xf32> to vector<1x128xf32>
    %105 = vector.extract_strided_slice %78 {offsets = [1, 0], sizes = [1, 128], strides = [1, 1]} : vector<4x128xf32> to vector<1x128xf32>
    %106 = vector.extract_strided_slice %78 {offsets = [2, 0], sizes = [1, 128], strides = [1, 1]} : vector<4x128xf32> to vector<1x128xf32>
    %107 = vector.extract_strided_slice %78 {offsets = [3, 0], sizes = [1, 128], strides = [1, 1]} : vector<4x128xf32> to vector<1x128xf32>
    %cst_41 = arith.constant 5.000000e-01 : f32
    %108 = vector.broadcast %cst_41 : f32 to vector<1x128xf32>
    %109 = arith.mulf %108, %106 : vector<1x128xf32>
    %110 = arith.subf %104, %109 : vector<1x128xf32>
    %cst_42 = arith.constant 5.000000e-01 : f32
    %111 = vector.broadcast %cst_42 : f32 to vector<1x128xf32>
    %112 = arith.mulf %111, %107 : vector<1x128xf32>
    %113 = arith.subf %105, %112 : vector<1x128xf32>
    %cst_43 = arith.constant 5.000000e-01 : f32
    %114 = vector.broadcast %cst_43 : f32 to vector<1x128xf32>
    %115 = arith.mulf %114, %106 : vector<1x128xf32>
    %116 = arith.addf %104, %115 : vector<1x128xf32>
    %cst_44 = arith.constant 5.000000e-01 : f32
    %117 = vector.broadcast %cst_44 : f32 to vector<1x128xf32>
    %118 = arith.mulf %117, %107 : vector<1x128xf32>
    %119 = arith.addf %105, %118 : vector<1x128xf32>
    %120 = arith.subf %100, %94 : vector<1x128xf32>
    %121 = arith.subf %103, %97 : vector<1x128xf32>
    %122 = arith.mulf %120, %121 : vector<1x128xf32>
    %123 = arith.subf %116, %110 : vector<1x128xf32>
    %124 = arith.subf %119, %113 : vector<1x128xf32>
    %125 = arith.mulf %123, %124 : vector<1x128xf32>
    %126 = arith.minimumf %100, %116 : vector<1x128xf32>
    %127 = arith.maximumf %94, %110 : vector<1x128xf32>
    %128 = arith.subf %126, %127 : vector<1x128xf32>
    %cst_45 = arith.constant 0.000000e+00 : f32
    %129 = vector.broadcast %cst_45 : f32 to vector<1x128xf32>
    %130 = arith.maximumf %128, %129 : vector<1x128xf32>
    %131 = arith.minimumf %103, %119 : vector<1x128xf32>
    %132 = arith.maximumf %97, %113 : vector<1x128xf32>
    %133 = arith.subf %131, %132 : vector<1x128xf32>
    %cst_46 = arith.constant 0.000000e+00 : f32
    %134 = vector.broadcast %cst_46 : f32 to vector<1x128xf32>
    %135 = arith.maximumf %133, %134 : vector<1x128xf32>
    %136 = arith.mulf %130, %135 : vector<1x128xf32>
    %137 = arith.addf %122, %125 : vector<1x128xf32>
    %138 = arith.subf %137, %136 : vector<1x128xf32>
    %139 = arith.divf %136, %138 : vector<1x128xf32>
    %140 = arith.maximumf %100, %116 : vector<1x128xf32>
    %141 = arith.minimumf %94, %110 : vector<1x128xf32>
    %142 = arith.subf %140, %141 : vector<1x128xf32>
    %143 = arith.maximumf %103, %119 : vector<1x128xf32>
    %144 = arith.minimumf %97, %113 : vector<1x128xf32>
    %145 = arith.subf %143, %144 : vector<1x128xf32>
    %146 = arith.mulf %142, %145 : vector<1x128xf32>
    %147 = arith.subf %146, %138 : vector<1x128xf32>
    %148 = arith.divf %147, %146 : vector<1x128xf32>
    %149 = arith.subf %139, %148 : vector<1x128xf32>
    %cst_47 = arith.constant 1.000000e+00 : f32
    %150 = vector.broadcast %cst_47 : f32 to vector<1x128xf32>
    %151 = arith.subf %150, %149 : vector<1x128xf32>
    %152 = arith.mulf %151, %79 : vector<1x128xf32>
    %153 = vector.shape_cast %152 : vector<1x128xf32> to vector<1x1x128xf32>
    %cst_48 = arith.constant dense<0.000000e+00> : vector<1xf32>
    %154 = vector.multi_reduction <add>, %153, %cst_48 [1, 2] : vector<1x1x128xf32> to vector<1xf32>
    %155 = vector.shape_cast %154 : vector<1xf32> to vector<1x1x1xf32>
    %156 = vector.extract %155[0, 0, 0] : f32 from vector<1x1x1xf32>
    %c0_49 = arith.constant 0 : index
    %157 = memref.load %arg7[%c0_49] : memref<5xf32, #tpu.memory_space<smem>>
    memref.store %35, %arg7[%c0_49] : memref<5xf32, #tpu.memory_space<smem>>
    %c1 = arith.constant 1 : index
    %158 = memref.load %arg7[%c1] : memref<5xf32, #tpu.memory_space<smem>>
    memref.store %62, %arg7[%c1] : memref<5xf32, #tpu.memory_space<smem>>
    %c2 = arith.constant 2 : index
    %159 = memref.load %arg7[%c2] : memref<5xf32, #tpu.memory_space<smem>>
    memref.store %76, %arg7[%c2] : memref<5xf32, #tpu.memory_space<smem>>
    %c3 = arith.constant 3 : index
    %160 = memref.load %arg7[%c3] : memref<5xf32, #tpu.memory_space<smem>>
    memref.store %87, %arg7[%c3] : memref<5xf32, #tpu.memory_space<smem>>
    %c4 = arith.constant 4 : index
    %161 = memref.load %arg7[%c4] : memref<5xf32, #tpu.memory_space<smem>>
    memref.store %156, %arg7[%c4] : memref<5xf32, #tpu.memory_space<smem>>
    return
  }
}

module attributes {stable_mosaic.version = 11 : i64} {
  func.func @_masks_kernel(%arg0: i32, %arg1: i32, %arg2: memref<64x256xbf16, #tpu.memory_space<vmem>>, %arg3: memref<64x256xbf16, #tpu.memory_space<vmem>>, %arg4: memref<64x1xf32, #tpu.memory_space<vmem>>, %arg5: memref<64x1xf32, #tpu.memory_space<vmem>>, %arg6: memref<64x128xf32, #tpu.memory_space<vmem>>, %arg7: memref<64x128xf32, #tpu.memory_space<vmem>>, %arg8: memref<64x128xf32, #tpu.memory_space<vmem>>, %arg9: memref<64x128xf32, #tpu.memory_space<vmem>>) attributes {dimension_semantics = [#tpu.dimension_semantics<parallel>, #tpu.dimension_semantics<arbitrary>], iteration_bounds = array<i64: 2, 1>, scalar_prefetch = 0 : i64, scratch_operands = 4 : i64, tpu.core_type = #tpu.core_type<tc>, window_params = [{transform_indices = @transform_0, window_bounds = array<i64: 64, 256>}, {transform_indices = @transform_1, window_bounds = array<i64: 64, 256>}, {transform_indices = @transform_2, window_bounds = array<i64: 64, 1>}, {transform_indices = @transform_3, window_bounds = array<i64: 64, 1>}]} {
    %c0_i32 = arith.constant 0 : i32
    %0 = arith.cmpi eq, %arg1, %c0_i32 : i32
    %1 = arith.extui %0 : i1 to i32
    %c0_i32_0 = arith.constant 0 : i32
    %2 = arith.cmpi ne, %1, %c0_i32_0 : i32
    scf.if %2 {
      %cst_28 = arith.constant 0.000000e+00 : f32
      %61 = vector.broadcast %cst_28 : f32 to vector<64x128xf32>
      %c0_29 = arith.constant 0 : index
      %c0_30 = arith.constant 0 : index
      %62 = vector.load %arg6[%c0_29, %c0_30] : memref<64x128xf32, #tpu.memory_space<vmem>>, vector<64x128xf32>
      tpu.vector_store %arg6[%c0_29, %c0_30], %61 {strides = array<i32>} : memref<64x128xf32, #tpu.memory_space<vmem>>, vector<64x128xf32>,
      %cst_31 = arith.constant 0.000000e+00 : f32
      %63 = vector.broadcast %cst_31 : f32 to vector<64x128xf32>
      %c0_32 = arith.constant 0 : index
      %c0_33 = arith.constant 0 : index
      %64 = vector.load %arg7[%c0_32, %c0_33] : memref<64x128xf32, #tpu.memory_space<vmem>>, vector<64x128xf32>
      tpu.vector_store %arg7[%c0_32, %c0_33], %63 {strides = array<i32>} : memref<64x128xf32, #tpu.memory_space<vmem>>, vector<64x128xf32>,
      %cst_34 = arith.constant 0.000000e+00 : f32
      %65 = vector.broadcast %cst_34 : f32 to vector<64x128xf32>
      %c0_35 = arith.constant 0 : index
      %c0_36 = arith.constant 0 : index
      %66 = vector.load %arg8[%c0_35, %c0_36] : memref<64x128xf32, #tpu.memory_space<vmem>>, vector<64x128xf32>
      tpu.vector_store %arg8[%c0_35, %c0_36], %65 {strides = array<i32>} : memref<64x128xf32, #tpu.memory_space<vmem>>, vector<64x128xf32>,
      %cst_37 = arith.constant 0.000000e+00 : f32
      %67 = vector.broadcast %cst_37 : f32 to vector<64x128xf32>
      %c0_38 = arith.constant 0 : index
      %c0_39 = arith.constant 0 : index
      %68 = vector.load %arg9[%c0_38, %c0_39] : memref<64x128xf32, #tpu.memory_space<vmem>>, vector<64x128xf32>
      tpu.vector_store %arg9[%c0_38, %c0_39], %67 {strides = array<i32>} : memref<64x128xf32, #tpu.memory_space<vmem>>, vector<64x128xf32>,
    } else {
    }
    %c0 = arith.constant 0 : index
    %c0_1 = arith.constant 0 : index
    %3 = vector.load %arg2[%c0, %c0_1] : memref<64x256xbf16, #tpu.memory_space<vmem>>, vector<64x256xbf16>
    %4 = arith.extf %3 : vector<64x256xbf16> to vector<64x256xf32>
    %c0_2 = arith.constant 0 : index
    %c0_3 = arith.constant 0 : index
    %5 = vector.load %arg3[%c0_2, %c0_3] : memref<64x256xbf16, #tpu.memory_space<vmem>>, vector<64x256xbf16>
    %6 = arith.extf %5 : vector<64x256xbf16> to vector<64x256xf32>
    %7 = math.absf %4 : vector<64x256xf32>
    %cst = arith.constant 0.000000e+00 : f32
    %8 = vector.broadcast %cst : f32 to vector<64x256xf32>
    %9 = arith.subf %8, %7 : vector<64x256xf32>
    %10 = math.exp %9 : vector<64x256xf32>
    %cst_4 = arith.constant 1.000000e+00 : f32
    %11 = vector.broadcast %cst_4 : f32 to vector<64x256xf32>
    %12 = arith.addf %11, %10 : vector<64x256xf32>
    %cst_5 = arith.constant 0.000000e+00 : f32
    %13 = vector.broadcast %cst_5 : f32 to vector<64x256xf32>
    %14 = arith.maximumf %4, %13 : vector<64x256xf32>
    %15 = math.log %12 : vector<64x256xf32>
    %16 = arith.addf %14, %15 : vector<64x256xf32>
    %cst_6 = arith.constant 0.000000e+00 : f32
    %17 = vector.broadcast %cst_6 : f32 to vector<64x256xf32>
    %18 = arith.cmpf oge, %4, %17 : vector<64x256xf32>
    %cst_7 = arith.constant 1.000000e+00 : f32
    %19 = vector.broadcast %cst_7 : f32 to vector<64x256xf32>
    %20 = arith.select %18, %19, %10 : vector<64x256xi1>, vector<64x256xf32>
    %21 = tpu.reciprocal %12 {approx = true} : vector<64x256xf32> -> vector<64x256xf32>
    %22 = arith.mulf %20, %21 : vector<64x256xf32>
    %23 = arith.mulf %6, %4 : vector<64x256xf32>
    %24 = arith.subf %16, %23 : vector<64x256xf32>
    %25 = arith.subf %6, %22 : vector<64x256xf32>
    %cst_8 = arith.constant -5.000000e-01 : f32
    %26 = vector.broadcast %cst_8 : f32 to vector<64x256xf32>
    %27 = arith.mulf %26, %6 : vector<64x256xf32>
    %cst_9 = arith.constant 7.500000e-01 : f32
    %28 = vector.broadcast %cst_9 : f32 to vector<64x256xf32>
    %29 = arith.addf %28, %27 : vector<64x256xf32>
    %30 = arith.mulf %29, %24 : vector<64x256xf32>
    %31 = arith.mulf %25, %25 : vector<64x256xf32>
    %32 = arith.mulf %30, %31 : vector<64x256xf32>
    %c0_10 = arith.constant 0 : index
    %c0_11 = arith.constant 0 : index
    %33 = vector.load %arg6[%c0_10, %c0_11] : memref<64x128xf32, #tpu.memory_space<vmem>>, vector<64x128xf32>
    %34 = vector.extract_strided_slice %32 {offsets = [0, 0], sizes = [64, 128], strides = [1, 1]} : vector<64x256xf32> to vector<64x128xf32>
    %35 = vector.extract_strided_slice %32 {offsets = [0, 128], sizes = [64, 128], strides = [1, 1]} : vector<64x256xf32> to vector<64x128xf32>
    %36 = arith.addf %34, %35 : vector<64x128xf32>
    %37 = arith.addf %33, %36 : vector<64x128xf32>
    %c0_12 = arith.constant 0 : index
    %c0_13 = arith.constant 0 : index
    %38 = vector.load %arg6[%c0_12, %c0_13] : memref<64x128xf32, #tpu.memory_space<vmem>>, vector<64x128xf32>
    tpu.vector_store %arg6[%c0_12, %c0_13], %37 {strides = array<i32>} : memref<64x128xf32, #tpu.memory_space<vmem>>, vector<64x128xf32>,
    %c0_14 = arith.constant 0 : index
    %c0_15 = arith.constant 0 : index
    %39 = vector.load %arg7[%c0_14, %c0_15] : memref<64x128xf32, #tpu.memory_space<vmem>>, vector<64x128xf32>
    %40 = arith.mulf %22, %6 : vector<64x256xf32>
    %41 = vector.extract_strided_slice %40 {offsets = [0, 0], sizes = [64, 128], strides = [1, 1]} : vector<64x256xf32> to vector<64x128xf32>
    %42 = vector.extract_strided_slice %40 {offsets = [0, 128], sizes = [64, 128], strides = [1, 1]} : vector<64x256xf32> to vector<64x128xf32>
    %43 = arith.addf %41, %42 : vector<64x128xf32>
    %44 = arith.addf %39, %43 : vector<64x128xf32>
    %c0_16 = arith.constant 0 : index
    %c0_17 = arith.constant 0 : index
    %45 = vector.load %arg7[%c0_16, %c0_17] : memref<64x128xf32, #tpu.memory_space<vmem>>, vector<64x128xf32>
    tpu.vector_store %arg7[%c0_16, %c0_17], %44 {strides = array<i32>} : memref<64x128xf32, #tpu.memory_space<vmem>>, vector<64x128xf32>,
    %c0_18 = arith.constant 0 : index
    %c0_19 = arith.constant 0 : index
    %46 = vector.load %arg8[%c0_18, %c0_19] : memref<64x128xf32, #tpu.memory_space<vmem>>, vector<64x128xf32>
    %47 = vector.extract_strided_slice %22 {offsets = [0, 0], sizes = [64, 128], strides = [1, 1]} : vector<64x256xf32> to vector<64x128xf32>
    %48 = vector.extract_strided_slice %22 {offsets = [0, 128], sizes = [64, 128], strides = [1, 1]} : vector<64x256xf32> to vector<64x128xf32>
    %49 = arith.addf %47, %48 : vector<64x128xf32>
    %50 = arith.addf %46, %49 : vector<64x128xf32>
    %c0_20 = arith.constant 0 : index
    %c0_21 = arith.constant 0 : index
    %51 = vector.load %arg8[%c0_20, %c0_21] : memref<64x128xf32, #tpu.memory_space<vmem>>, vector<64x128xf32>
    tpu.vector_store %arg8[%c0_20, %c0_21], %50 {strides = array<i32>} : memref<64x128xf32, #tpu.memory_space<vmem>>, vector<64x128xf32>,
    %c0_22 = arith.constant 0 : index
    %c0_23 = arith.constant 0 : index
    %52 = vector.load %arg9[%c0_22, %c0_23] : memref<64x128xf32, #tpu.memory_space<vmem>>, vector<64x128xf32>
    %53 = vector.extract_strided_slice %6 {offsets = [0, 0], sizes = [64, 128], strides = [1, 1]} : vector<64x256xf32> to vector<64x128xf32>
    %54 = vector.extract_strided_slice %6 {offsets = [0, 128], sizes = [64, 128], strides = [1, 1]} : vector<64x256xf32> to vector<64x128xf32>
    %55 = arith.addf %53, %54 : vector<64x128xf32>
    %56 = arith.addf %52, %55 : vector<64x128xf32>
    %c0_24 = arith.constant 0 : index
    %c0_25 = arith.constant 0 : index
    %57 = vector.load %arg9[%c0_24, %c0_25] : memref<64x128xf32, #tpu.memory_space<vmem>>, vector<64x128xf32>
    tpu.vector_store %arg9[%c0_24, %c0_25], %56 {strides = array<i32>} : memref<64x128xf32, #tpu.memory_space<vmem>>, vector<64x128xf32>,
    %c0_i32_26 = arith.constant 0 : i32
    %58 = arith.cmpi eq, %arg1, %c0_i32_26 : i32
    %59 = arith.extui %58 : i1 to i32
    %c0_i32_27 = arith.constant 0 : i32
    %60 = arith.cmpi ne, %59, %c0_i32_27 : i32
    scf.if %60 {
      %c0_28 = arith.constant 0 : index
      %c0_29 = arith.constant 0 : index
      %61 = vector.load %arg6[%c0_28, %c0_29] : memref<64x128xf32, #tpu.memory_space<vmem>>, vector<64x128xf32>
      %cst_30 = arith.constant dense<0.000000e+00> : vector<64xf32>
      %62 = vector.multi_reduction <add>, %61, %cst_30 [1] : vector<64x128xf32> to vector<64xf32>
      %63 = vector.shape_cast %62 : vector<64xf32> to vector<64x1xf32>
      %c0_31 = arith.constant 0 : index
      %c0_32 = arith.constant 0 : index
      %64 = vector.load %arg4[%c0_31, %c0_32] : memref<64x1xf32, #tpu.memory_space<vmem>>, vector<64x1xf32>
      tpu.vector_store %arg4[%c0_31, %c0_32], %63 {strides = array<i32>} : memref<64x1xf32, #tpu.memory_space<vmem>>, vector<64x1xf32>,
      %c0_33 = arith.constant 0 : index
      %c0_34 = arith.constant 0 : index
      %65 = vector.load %arg7[%c0_33, %c0_34] : memref<64x128xf32, #tpu.memory_space<vmem>>, vector<64x128xf32>
      %cst_35 = arith.constant dense<0.000000e+00> : vector<64xf32>
      %66 = vector.multi_reduction <add>, %65, %cst_35 [1] : vector<64x128xf32> to vector<64xf32>
      %67 = vector.shape_cast %66 : vector<64xf32> to vector<64x1xf32>
      %c0_36 = arith.constant 0 : index
      %c0_37 = arith.constant 0 : index
      %68 = vector.load %arg8[%c0_36, %c0_37] : memref<64x128xf32, #tpu.memory_space<vmem>>, vector<64x128xf32>
      %cst_38 = arith.constant dense<0.000000e+00> : vector<64xf32>
      %69 = vector.multi_reduction <add>, %68, %cst_38 [1] : vector<64x128xf32> to vector<64xf32>
      %70 = vector.shape_cast %69 : vector<64xf32> to vector<64x1xf32>
      %c0_39 = arith.constant 0 : index
      %c0_40 = arith.constant 0 : index
      %71 = vector.load %arg9[%c0_39, %c0_40] : memref<64x128xf32, #tpu.memory_space<vmem>>, vector<64x128xf32>
      %cst_41 = arith.constant dense<0.000000e+00> : vector<64xf32>
      %72 = vector.multi_reduction <add>, %71, %cst_41 [1] : vector<64x128xf32> to vector<64xf32>
      %73 = vector.shape_cast %72 : vector<64xf32> to vector<64x1xf32>
      %cst_42 = arith.constant 2.000000e+00 : f32
      %74 = vector.broadcast %cst_42 : f32 to vector<64x1xf32>
      %75 = arith.mulf %74, %67 : vector<64x1xf32>
      %cst_43 = arith.constant 9.99999997E-7 : f32
      %76 = vector.broadcast %cst_43 : f32 to vector<64x1xf32>
      %77 = arith.addf %75, %76 : vector<64x1xf32>
      %78 = arith.addf %70, %73 : vector<64x1xf32>
      %cst_44 = arith.constant 9.99999997E-7 : f32
      %79 = vector.broadcast %cst_44 : f32 to vector<64x1xf32>
      %80 = arith.addf %78, %79 : vector<64x1xf32>
      %81 = arith.divf %77, %80 : vector<64x1xf32>
      %cst_45 = arith.constant 1.000000e+00 : f32
      %82 = vector.broadcast %cst_45 : f32 to vector<64x1xf32>
      %83 = arith.subf %82, %81 : vector<64x1xf32>
      %c0_46 = arith.constant 0 : index
      %c0_47 = arith.constant 0 : index
      %84 = vector.load %arg5[%c0_46, %c0_47] : memref<64x1xf32, #tpu.memory_space<vmem>>, vector<64x1xf32>
      tpu.vector_store %arg5[%c0_46, %c0_47], %83 {strides = array<i32>} : memref<64x1xf32, #tpu.memory_space<vmem>>, vector<64x1xf32>,
    } else {
    }
    return
  }
  func.func @transform_0(%arg0: i32, %arg1: i32) -> (i32, i32) {
    %c0_i32 = arith.constant 0 : i32
    return %arg0, %arg1 : i32, i32
  }
  func.func @transform_1(%arg0: i32, %arg1: i32) -> (i32, i32) {
    %c0_i32 = arith.constant 0 : i32
    return %arg0, %arg1 : i32, i32
  }
  func.func @transform_2(%arg0: i32, %arg1: i32) -> (i32, i32) {
    %c0_i32 = arith.constant 0 : i32
    %c0_i32_0 = arith.constant 0 : i32
    return %arg0, %c0_i32 : i32, i32
  }
  func.func @transform_3(%arg0: i32, %arg1: i32) -> (i32, i32) {
    %c0_i32 = arith.constant 0 : i32
    %c0_i32_0 = arith.constant 0 : i32
    return %arg0, %c0_i32 : i32, i32
  }
}

</mosaic_0001>

<llo_original>
// kernel: _compute_losses.2
$region0: #{_compute_losses.2}
  #allocation0 [shape = 'u32[]', space=smem, size = 0x4, offset = 0x4, fixed_abs, tag = 'smem constant byte address 0x4 - core index']
  #allocation1 [shape = 'u32[144,128]{1,0:T(1,128)}', space=vmem, size = 0x12000, scoped, tag = 'internal scratch']
  %s0 = inlined_call_operand.vmem [shape: f32[2,8,128], index: 0, kind: input, shape index: {}]
  %s1 = inlined_call_operand.vmem [shape: s32[2,8], index: 1, kind: input, shape index: {}]
  %s2 = inlined_call_operand.vmem [shape: f32[2,8], index: 2, kind: input, shape index: {}]
  %s3 = inlined_call_operand.vmem [shape: f32[2,1], index: 3, kind: input, shape index: {}]
  %s4 = inlined_call_operand.vmem [shape: f32[4,128], index: 4, kind: input, shape index: {}]
  %s5 = inlined_call_operand.vmem [shape: f32[4,128], index: 5, kind: input, shape index: {}]
  %s6 = inlined_call_operand.vmem [shape: f32[1,128], index: 6, kind: input, shape index: {}]
  %s7 = inlined_call_operand.vmem [shape: f32[5], index: 7, kind: output, shape index: {}]
  %s8 = sld [smem:[#allocation0]]
  $region38: #{_compute_losses.2} parent=0
    _
  %s10 = ssub.s32 1, %s8
  %s11 = scalar_select 0, %s10, %s8
  $region1: #{_compute_losses.2} parent=0
    #allocation2 [shape = 'u8[512]{0}', space=smem, size = 0x200, scoped, tag = 'output window, operand 0, single buffered']
    #allocation3 [shape = 's32[1]{0}', space=sflag, size = 0x4, scoped, tag = 'scoped memory for _compute_losses.2']
    %12 = vsyncpa [#allocation3], 0
    // Predicated region
    $region2: #{_compute_losses.2} parent=1 // pred_check
      _
    $region3: #{_compute_losses.2} parent=1 // pred_check_branch
      %14 = sbr.rel (0) target = $region5
    $region4: #{_compute_losses.2} parent=1 // pred_region
      _
    $region5: #{_compute_losses.2} parent=1 // pred_fallthru
      _
    // Predicated region
    $region6: #{_compute_losses.2} parent=1 // pred_check
      _
    $region7: #{_compute_losses.2} parent=1 // pred_check_branch
      %16 = sbr.rel (0) target = $region9
    $region8: #{_compute_losses.2} parent=1 // pred_region
      _
    $region9: #{_compute_losses.2} parent=1 // pred_fallthru
      _
    // Predicated region
    $region10: #{_compute_losses.2} parent=1 // pred_check
      _
    $region11: #{_compute_losses.2} parent=1 // pred_check_branch
      %18 = sbr.rel (0) target = $region13
    $region12: #{_compute_losses.2} parent=1 // pred_region
      _
    $region13: #{_compute_losses.2} parent=1 // pred_fallthru
      _
    // Predicated region
    $region14: #{_compute_losses.2} parent=1 // pred_check
      _
    $region15: #{_compute_losses.2} parent=1 // pred_check_branch
      %20 = sbr.rel (0) target = $region17
    $region16: #{_compute_losses.2} parent=1 // pred_region
      _
    $region17: #{_compute_losses.2} parent=1 // pred_fallthru
      _
    // Predicated region
    $region18: #{_compute_losses.2} parent=1 // pred_check
      _
    $region19: #{_compute_losses.2} parent=1 // pred_check_branch
      %22 = sbr.rel (0) target = $region21
    $region20: #{_compute_losses.2} parent=1 // pred_region
      _
    $region21: #{_compute_losses.2} parent=1 // pred_fallthru
      _
    // Predicated region
    $region22: #{_compute_losses.2} parent=1 // pred_check
      _
    $region23: #{_compute_losses.2} parent=1 // pred_check_branch
      %24 = sbr.rel (0) target = $region25
    $region24: #{_compute_losses.2} parent=1 // pred_region
      _
    $region25: #{_compute_losses.2} parent=1 // pred_fallthru
      _
    // Predicated region
    $region26: #{_compute_losses.2} parent=1 // pred_check
      _
    $region27: #{_compute_losses.2} parent=1 // pred_check_branch
      %26 = sbr.rel (0) target = $region29
    $region28: #{_compute_losses.2} parent=1 // pred_region
      _
    $region29: #{_compute_losses.2} parent=1 // pred_fallthru
      _
    %v27 = vld [vmem:[%s0] sm:$0xff]
    %v28 = vld [vmem:[%s0 + $0x8] sm:$0xff]
    %v29 = vld [vmem:[%s1] sm:$0x3]
    %v30 = vld [vmem:[%s2] sm:$0x3]
    %v31 = vld [vmem:[%s3] sm:$0x3]
    %v32 = vlaneseq
    %v33 = vand.u32 %v32, 127
    %v34 = vlaneseq
    %v35 = vshrl.u32 %v34, 7
    %v36 = vsub.s32 0, %v35
    %v37 = vrot.slane %v29, %v36
    %39 = vbcast.lane.b32.xlu0 %v37, 256
    %v40 = vpop.permute.xlu0 %39
    %v41 = vlaneseq
    %v42 = vshrl.u32 %v41, 7
    %v43 = vsub.s32 1, %v42
    %v44 = vrot.slane %v29, %v43
    %46 = vbcast.lane.b32.xlu0 %v44, 256
    %v47 = vpop.permute.xlu0 %46
    %vm48 = vcmp.eq.s32.totalorder %v33, %v40
    %vm49 = vcmp.eq.s32.totalorder %v33, %v47
    %v50 = vsel %vm48, 1, 0
    %v51 = vsel %vm49, 1, 0
    %v52 = vcvt.s32.f32 %v50
    %v53 = vcvt.s32.f32 %v51
    %v54 = vmul.f32 %v27, %v52
    %v55 = vmul.f32 %v28, %v53
    %56 = vadd.xlane.f32.xlu0 %v54
    %v57 = vpop.xlane.xlu0 %56
    %58 = vadd.xlane.f32.xlu0 %v55
    %v59 = vpop.xlane.xlu0 %58
    %60 = vmax.xlane.f32.xlu0 %v27
    %v61 = vpop.xlane.xlu0 %60
    %62 = vmax.xlane.f32.xlu0 %v28
    %v63 = vpop.xlane.xlu0 %62
    %v64 = vsub.f32 %v27, %v61
    %v65 = vsub.f32 %v28, %v63
    %v66 = vmul.f32 %v64, 1.442695
    %v67 = vpow.pop %v66
    %v68 = vmul.f32 %v65, 1.442695
    %v69 = vpow.pop %v68
    %70 = vadd.xlane.f32.xlu0 %v67
    %v71 = vpop.xlane.xlu0 %70
    %72 = vadd.xlane.f32.xlu0 %v69
    %v73 = vpop.xlane.xlu0 %72
    %v74 = vlog2.pop %v71
    %v75 = vmul.f32 %v74, 0.6931472
    %v76 = vlog2.pop %v73
    %v77 = vmul.f32 %v76, 0.6931472
    %v78 = vadd.f32 %v61, %v75
    %v79 = vadd.f32 %v63, %v77
    %v80 = vsub.f32 %v78, %v57
    %v81 = vsub.f32 %v79, %v59
    %vm82 = vcmp.eq.s32.totalorder %v29, 4
    %v83 = vsel %vm82, 0.1, 1.0
    %v86 = vlaneseq
    %v87 = vshrl.u32 %v86, 7
    %v88 = vsub.s32 %v33, %v87
    %v89 = vrot.slane %v80, %v88
    %v90 = vlaneseq
    %v91 = vshrl.u32 %v90, 7
    %v92 = vsub.s32 %v33, %v91
    %v93 = vrot.slane %v81, %v92
    %vm94 = vcmask 1041409
    %v95 = vsel %vm94, %v93, %v89
    %v97 = vmul.f32 %v83, %v95
    %vm98 = vcmask 58368
    %v99 = vsel %vm98, %v97, 0.0
    %100 = vadd.xlane.f32.xlu0 %v99
    %v101 = vpop.xlane.xlu0 %100
    %v102 = vrot.slane %v101, 4
    %v103 = vadd.f32 %v101, %v102
    %v104 = vrot.slane %v103, 2
    %v105 = vadd.f32 %v103, %v104
    %v106 = vrot.slane %v105, 1
    %v107 = vadd.f32 %v105, %v106
    %s108 = vtos %v107
    %v109 = vsel %vm98, %v83, 0.0
    %110 = vadd.xlane.f32.xlu0 %v109
    %v111 = vpop.xlane.xlu0 %110
    %v112 = vrot.slane %v111, 4
    %v113 = vadd.f32 %v111, %v112
    %v114 = vrot.slane %v113, 2
    %v115 = vadd.f32 %v113, %v114
    %v116 = vrot.slane %v115, 1
    %v117 = vadd.f32 %v115, %v116
    %s118 = vtos %v117
    %v119 = vstv %s118
    %v120 = vrcp.pop %v119
    %s121 = vtos %v120
    %s122 = smul.f32 %s108, %s121
    %v123 = vcvt.s32.f32 %v33
    %vm124 = vcmp.ge.f32.partialorder %v27, %v61
    %vm125 = vcmp.ge.f32.partialorder %v28, %v63
    %v126 = vsel %vm124, %v123, 128.0
    %v127 = vsel %vm125, %v123, 128.0
    %128 = vmin.xlane.f32.xlu0 %v126
    %v129 = vpop.xlane.xlu0 %128
    %130 = vmin.xlane.f32.xlu0 %v127
    %v131 = vpop.xlane.xlu0 %130
    %v132 = vcvt.s32.f32 %v29
    %v134 = vlaneseq
    %v135 = vshrl.u32 %v134, 7
    %v136 = vsub.s32 0, %v135
    %v137 = vrot.slane %v132, %v136
    %139 = vbcast.lane.b32.xlu0 %v137, 256
    %v140 = vpop.permute.xlu0 %139
    %v141 = vlaneseq
    %v142 = vshrl.u32 %v141, 7
    %v143 = vsub.s32 1, %v142
    %v144 = vrot.slane %v132, %v143
    %146 = vbcast.lane.b32.xlu0 %v144, 256
    %v147 = vpop.permute.xlu0 %146
    %vm150 = vcmp.eq.f32.partialorder %v129, %v140
    %vm151 = vcmp.eq.f32.partialorder %v131, %v147
    %vm152 = vcmp.gt.f32.partialorder %v30, 0.0
    %v153 = vsel %vm152, 1, 0
    %v154 = vlaneseq
    %v155 = vshrl.u32 %v154, 7
    %v156 = vsub.s32 0, %v155
    %v157 = vrot.slane %v153, %v156
    %159 = vbcast.lane.b32.xlu0 %v157, 256
    %v160 = vpop.permute.xlu0 %159
    %v161 = vlaneseq
    %v162 = vshrl.u32 %v161, 7
    %v163 = vsub.s32 1, %v162
    %v164 = vrot.slane %v153, %v163
    %166 = vbcast.lane.b32.xlu0 %v164, 256
    %v167 = vpop.permute.xlu0 %166
    %vm168 = vcmp.ne.s32.totalorder %v160, 0
    %vm169 = vcmp.ne.s32.totalorder %v167, 0
    %vm170 = vmand %vm150, %vm168
    %vm171 = vmand %vm151, %vm169
    %v172 = vsel %vm170, 1.0, 0.0
    %v173 = vsel %vm171, 1.0, 0.0
    %176 = vset.pattern.permute.xlu0 0
    %177 = vperm.xlu0 %176, %v172
    %v178 = vpop.permute.xlu0 %177
    %179 = vset.pattern.permute.xlu0 0
    %180 = vperm.xlu0 %179, %v173
    %v181 = vpop.permute.xlu0 %180
    %v182 = vlaneseq
    %v183 = vshrl.u32 %v182, 7
    %v184 = vsub.s32 %v33, %v183
    %v185 = vrot.slane %v178, %v184
    %v186 = vlaneseq
    %v187 = vshrl.u32 %v186, 7
    %v188 = vsub.s32 %v33, %v187
    %v189 = vrot.slane %v181, %v188
    %v190 = vsel %vm94, %v189, %v185
    %v192 = vsel %vm98, %v190, 0.0
    %193 = vadd.xlane.f32.xlu0 %v192
    %v194 = vpop.xlane.xlu0 %193
    %v195 = vrot.slane %v194, 4
    %v196 = vadd.f32 %v194, %v195
    %v197 = vrot.slane %v196, 2
    %v198 = vadd.f32 %v196, %v197
    %v199 = vrot.slane %v198, 1
    %v200 = vadd.f32 %v198, %v199
    %s201 = vtos %v200
    %v202 = vsel %vm98, %v30, 0.0
    %203 = vadd.xlane.f32.xlu0 %v202
    %v204 = vpop.xlane.xlu0 %203
    %v205 = vrot.slane %v204, 4
    %v206 = vadd.f32 %v204, %v205
    %v207 = vrot.slane %v206, 2
    %v208 = vadd.f32 %v206, %v207
    %v209 = vrot.slane %v208, 1
    %v210 = vadd.f32 %v208, %v209
    %s211 = vtos %v210
    %s212 = smax.f32 %s211, 1.0
    %s213 = smul.f32 %s201, 100.0
    %v214 = vstv %s212
    %v215 = vrcp.pop %v214
    %s216 = vtos %v215
    %s217 = smul.f32 %s213, %s216
    %s218 = ssub.f32 100.0, %s217
    %vm219 = vcmp.ne.f32.partialorder %v129, 4.0
    %vm220 = vcmp.ne.f32.partialorder %v131, 4.0
    %v221 = vsel %vm219, 1.0, 0.0
    %v222 = vsel %vm220, 1.0, 0.0
    %v225 = vlaneseq
    %v226 = vshrl.u32 %v225, 7
    %v227 = vsub.s32 %v33, %v226
    %v228 = vrot.slane %v221, %v227
    %v229 = vlaneseq
    %v230 = vshrl.u32 %v229, 7
    %v231 = vsub.s32 %v33, %v230
    %v232 = vrot.slane %v222, %v231
    %v233 = vsel %vm94, %v232, %v228
    %v235 = vsel %vm98, %v233, 0.0
    %236 = vadd.xlane.f32.xlu0 %v235
    %v237 = vpop.xlane.xlu0 %236
    %v238 = vsub.f32 %v237, %v31
    %v239 = vand.u32 2147483647, %v238
    %vm240 = vcmask 1024
    %v241 = vsel %vm240, %v239, 0.0
    %242 = vadd.xlane.f32.xlu0 %v241
    %v243 = vpop.xlane.xlu0 %242
    %v244 = vrot.slane %v243, 4
    %v245 = vadd.f32 %v243, %v244
    %v246 = vrot.slane %v245, 2
    %v247 = vadd.f32 %v245, %v246
    %v248 = vrot.slane %v247, 1
    %v249 = vadd.f32 %v247, %v248
    %s250 = vtos %v249
    %v251 = vrcp.pop 2.0
    %s252 = vtos %v251
    %s253 = smul.f32 %s250, %s252
    %v254 = vld [vmem:[%s4] sm:$0xf]
    %v255 = vld [vmem:[%s5] sm:$0xf]
    %v256 = vld [vmem:[%s6] sm:$0x1]
    %v257 = vsub.f32 %v254, %v255
    %v258 = vand.u32 2147483647, %v257
    %v260 = vlaneseq
    %v261 = vshrl.u32 %v260, 7
    %v262 = vsub.s32 0, %v261
    %v263 = vrot.slane %v256, %v262
    %v265 = vmul.f32 %v258, %v263
    %vm266 = vcmask 1043456
    %v267 = vsel %vm266, %v265, 0.0
    %268 = vadd.xlane.f32.xlu0 %v267
    %v269 = vpop.xlane.xlu0 %268
    %v270 = vrot.slane %v269, 4
    %v271 = vadd.f32 %v269, %v270
    %v272 = vrot.slane %v271, 2
    %v273 = vadd.f32 %v271, %v272
    %v274 = vrot.slane %v273, 1
    %v275 = vadd.f32 %v273, %v274
    %s276 = vtos %v275
    %v277 = vmul.f32 %v254, 0.5
    %v279 = vrot.slane %v277, 2
    %v281 = vsub.f32 %v254, %v279
    %v282 = vadd.f32 %v254, %v279
    %v283 = vmul.f32 %v255, 0.5
    %v285 = vrot.slane %v283, 2
    %v287 = vsub.f32 %v255, %v285
    %v288 = vadd.f32 %v255, %v285
    %v289 = vsub.f32 %v282, %v281
    %v291 = vrot.slane %v289, 1
    %v293 = vmul.f32 %v289, %v291
    %v294 = vsub.f32 %v288, %v287
    %v296 = vrot.slane %v294, 1
    %v298 = vmul.f32 %v294, %v296
    %v299 = vmin.f32 %v282, %v288
    %v300 = vmax.f32 %v281, %v287
    %v301 = vsub.f32 %v299, %v300
    %v302 = vmax.f32 %v301, 0.0
    %v304 = vrot.slane %v302, 1
    %v306 = vmul.f32 %v302, %v304
    %v307 = vadd.f32 %v293, %v298
    %v308 = vsub.f32 %v307, %v306
    %v309 = vrcp.pop %v308
    %v310 = vmul.f32 %v306, %v309
    %v311 = vmax.f32 %v282, %v288
    %v312 = vmin.f32 %v281, %v287
    %v313 = vsub.f32 %v311, %v312
    %v315 = vrot.slane %v313, 1
    %v317 = vmul.f32 %v313, %v315
    %v318 = vsub.f32 %v317, %v308
    %v319 = vrcp.pop %v317
    %v320 = vmul.f32 %v318, %v319
    %v321 = vsub.f32 %v310, %v320
    %v322 = vsub.f32 1.0, %v321
    %v323 = vmul.f32 %v322, %v256
    %vm324 = vcmask 1040384
    %v325 = vsel %vm324, %v323, 0.0
    %326 = vadd.xlane.f32.xlu0 %v325
    %v327 = vpop.xlane.xlu0 %326
    %v328 = vrot.slane %v327, 4
    %v329 = vadd.f32 %v327, %v328
    %v330 = vrot.slane %v329, 2
    %v331 = vadd.f32 %v329, %v330
    %v332 = vrot.slane %v331, 1
    %v333 = vadd.f32 %v331, %v332
    %s334 = vtos %v333
    %s335 = scalar_lea.smem [#allocation2], 0
    %336 = sst [smem:[%s335]] %s122
    %s337 = scalar_lea.smem [#allocation2], 1
    %338 = sst [smem:[%s337]] %s218
    %s339 = scalar_lea.smem [#allocation2], 2
    %340 = sst [smem:[%s339]] %s253
    %s341 = scalar_lea.smem [#allocation2], 3
    %342 = sst [smem:[%s341]] %s276
    %s343 = scalar_lea.smem [#allocation2], 4
    %344 = sst [smem:[%s343]] %s334
    // Predicated region
    $region30: #{_compute_losses.2} parent=1 // pred_check
      _
    $region31: #{_compute_losses.2} parent=1 // pred_check_branch
      %346 = sbr.rel (0) target = $region33
    $region32: #{_compute_losses.2} parent=1 // pred_region
      %s348 = ssub.s32 16, 16
      %349 = vsyncadd [#allocation3], %s348
      %s351 = sshll.u32 %s7, 4
      %s352 = int_to_ptr.vmem [resolvable:$true] %s351
      %354 = dma.smem_to_vmem [#allocation2], 16, %s352, [#allocation3]
    $region33: #{_compute_losses.2} parent=1 // pred_fallthru
      _
    // Predicated region
    $region34: #{_compute_losses.2} parent=1 // pred_check
      _
    $region35: #{_compute_losses.2} parent=1 // pred_check_branch
      %356 = sbr.rel (0) target = $region37
    $region36: #{_compute_losses.2} parent=1 // pred_region
      %357 = dma.done [#allocation3], 16
    $region37: #{_compute_losses.2} parent=1 // pred_fallthru
      _
    %358 = sfence
    %359 = vsyncpa [#allocation3], 1

// kernel: _compute_losses.3
$region0: #{_compute_losses.3}
  #allocation0 [shape = 'u32[]', space=smem, size = 0x4, offset = 0x4, fixed_abs, tag = 'smem constant byte address 0x4 - core index']
  #allocation1 [shape = 'u32[144,128]{1,0:T(1,128)}', space=vmem, size = 0x12000, scoped, tag = 'internal scratch']
  #allocation2 [shape = 'f32[64,128]{1,0:T(8,128)}', space=vmem, size = 0x8000, scoped, tag = 'scratch operand']
  #allocation3 [shape = 'f32[64,128]{1,0:T(8,128)}', space=vmem, size = 0x8000, scoped, tag = 'scratch operand']
  #allocation4 [shape = 'f32[64,128]{1,0:T(8,128)}', space=vmem, size = 0x8000, scoped, tag = 'scratch operand']
  #allocation5 [shape = 'f32[64,128]{1,0:T(8,128)}', space=vmem, size = 0x8000, scoped, tag = 'scratch operand']
  %s0 = inlined_call_operand.vmem [shape: bf16[128,256], index: 0, kind: input, shape index: {}]
  %s1 = inlined_call_operand.vmem [shape: bf16[128,256], index: 1, kind: input, shape index: {}]
  %s2 = inlined_call_operand.vmem [shape: f32[128,1], index: 2, kind: output, shape index: {0}]
  %s3 = inlined_call_operand.vmem [shape: f32[128,1], index: 3, kind: output, shape index: {1}]
  %4 = xla_tuple %s2, %s3
  %s5 = sld [smem:[#allocation0]]
  $region57: #{_compute_losses.3} parent=0
    _
  %s7 = ssub.s32 1, %s5
  %s8 = scalar_select 0, %s7, %s5
  loop: start=0, step=1, limit=4
  $region2: #{_compute_losses.3} parent=0 // loop_pre_header
    _
  $region3: #{_compute_losses.3} parent=0 // loop_header
    %s10 = sphi 0, %s14
    %p11 = scmp.ge.s32.totalorder %s10, 4
    %s17 = sphi 0, %s29
    %s18 = sphi 0, %s25
    %s19 = sphi 0, %s17
    %s20 = sphi 0, %s18
    %s21 = sphi 0, %s19
    %s22 = sphi 0, %s20
    %s34 = sphi 0, %s36
    %s37 = sphi 0, %s34
    %s38 = sphi 0, %s37
    %s54 = sphi 0, %s38
    %s62 = sphi 0, %s64
    %s65 = sphi 0, %s62
    %s66 = sphi 0, %s65
    %s82 = sphi 0, %s66
    %s88 = sphi 0, %s90
    %s91 = sphi 0, %s88
    %s92 = sphi 0, %s91
    %s108 = sphi 0, %s92
    %s114 = sphi 0, %s116
    %s117 = sphi 0, %s114
    %s118 = sphi 0, %s117
    %s134 = sphi 0, %s118
  $region4: #{_compute_losses.3} parent=0 // loop_header_branch
    %13 = sbr.rel (%p11) target = $region8
  $region5: #{_compute_losses.3} parent=0 // loop_body
    %s15 = ssub.s32 %s10, 1
    %s16 = ssub.s32 %s10, 2
    %s23 = sadd.s32 1, %s18
    %p24 = scmp.ge.s32.totalorder %s23, 1
    %s25 = scalar_select %p24, 0, %s23
    %s26 = sadd.s32 1, %s17
    %s27 = scalar_select %p24, %s26, %s17
    %p28 = scmp.ge.s32.totalorder %s27, 2
    %s29 = scalar_select %p28, 0, %s27
    %s30 = ssub.s32 %s17, %s29
    %s31 = ssub.s32 %s18, %s25
    %s32 = sor.u32 %s30, %s31
    %p33 = scmp.eq.s32.totalorder %s32, 0
    %s35 = sadd.s32 %s34, 1
    %s36 = scalar_select %p33, %s34, %s35
    %p39 = pneg %p33
    %p40 = scmp.eq.s32.totalorder %s10, 1
    %p41 = por %p39, %p40
    %p42 = scmp.ne.s32.totalorder %s34, %s37
    %p43 = scmp.eq.s32.totalorder %s10, 0
    %p44 = por %p42, %p43
    %p45 = scmp.ne.s32.totalorder %s34, %s37
    %p46 = scmp.eq.s32.totalorder %s15, 1
    %p47 = por %p45, %p46
    %p48 = scmp.ne.s32.totalorder %s37, %s38
    %p49 = scmp.eq.s32.totalorder %s15, 0
    %p50 = por %p48, %p49
    %p51 = scmp.ne.s32.totalorder %s37, %s38
    %p52 = scmp.eq.s32.totalorder %s16, 1
    %p53 = por %p51, %p52
    %p55 = scmp.ne.s32.totalorder %s38, %s54
    %p56 = scmp.eq.s32.totalorder %s16, 0
    %p57 = por %p55, %p56
    %s58 = ssub.s32 %s17, %s29
    %s59 = ssub.s32 %s18, %s25
    %s60 = sor.u32 %s58, %s59
    %p61 = scmp.eq.s32.totalorder %s60, 0
    %s63 = sadd.s32 %s62, 1
    %s64 = scalar_select %p61, %s62, %s63
    %p67 = pneg %p61
    %p68 = scmp.eq.s32.totalorder %s10, 1
    %p69 = por %p67, %p68
    %p70 = scmp.ne.s32.totalorder %s62, %s65
    %p71 = scmp.eq.s32.totalorder %s10, 0
    %p72 = por %p70, %p71
    %p73 = scmp.ne.s32.totalorder %s62, %s65
    %p74 = scmp.eq.s32.totalorder %s15, 1
    %p75 = por %p73, %p74
    %p76 = scmp.ne.s32.totalorder %s65, %s66
    %p77 = scmp.eq.s32.totalorder %s15, 0
    %p78 = por %p76, %p77
    %p79 = scmp.ne.s32.totalorder %s65, %s66
    %p80 = scmp.eq.s32.totalorder %s16, 1
    %p81 = por %p79, %p80
    %p83 = scmp.ne.s32.totalorder %s66, %s82
    %p84 = scmp.eq.s32.totalorder %s16, 0
    %p85 = por %p83, %p84
    %s86 = ssub.s32 %s17, %s29
    %p87 = scmp.eq.s32.totalorder %s86, 0
    %s89 = sadd.s32 %s88, 1
    %s90 = scalar_select %p87, %s88, %s89
    %p93 = pneg %p87
    %p94 = scmp.eq.s32.totalorder %s10, 1
    %p95 = por %p93, %p94
    %p96 = scmp.ne.s32.totalorder %s88, %s91
    %p97 = scmp.eq.s32.totalorder %s10, 0
    %p98 = por %p96, %p97
    %p99 = scmp.ne.s32.totalorder %s88, %s91
    %p100 = scmp.eq.s32.totalorder %s15, 1
    %p101 = por %p99, %p100
    %p102 = scmp.ne.s32.totalorder %s91, %s92
    %p103 = scmp.eq.s32.totalorder %s15, 0
    %p104 = por %p102, %p103
    %p105 = scmp.ne.s32.totalorder %s91, %s92
    %p106 = scmp.eq.s32.totalorder %s16, 1
    %p107 = por %p105, %p106
    %p109 = scmp.ne.s32.totalorder %s92, %s108
    %p110 = scmp.eq.s32.totalorder %s16, 0
    %p111 = por %p109, %p110
    %s112 = ssub.s32 %s17, %s29
    %p113 = scmp.eq.s32.totalorder %s112, 0
    %s115 = sadd.s32 %s114, 1
    %s116 = scalar_select %p113, %s114, %s115
    %p119 = pneg %p113
    %p120 = scmp.eq.s32.totalorder %s10, 1
    %p121 = por %p119, %p120
    %p122 = scmp.ne.s32.totalorder %s114, %s117
    %p123 = scmp.eq.s32.totalorder %s10, 0
    %p124 = por %p122, %p123
    %p125 = scmp.ne.s32.totalorder %s114, %s117
    %p126 = scmp.eq.s32.totalorder %s15, 1
    %p127 = por %p125, %p126
    %p128 = scmp.ne.s32.totalorder %s117, %s118
    %p129 = scmp.eq.s32.totalorder %s15, 0
    %p130 = por %p128, %p129
    %p131 = scmp.ne.s32.totalorder %s117, %s118
    %p132 = scmp.eq.s32.totalorder %s16, 1
    %p133 = por %p131, %p132
    %p135 = scmp.ne.s32.totalorder %s118, %s134
    %p136 = scmp.eq.s32.totalorder %s16, 0
    %p137 = por %p135, %p136
    %p138 = scmp.le.s32.totalorder 1, %s10
    %p139 = scmp.lt.s32.totalorder %s10, 3
    %p140 = pnand %p138, %p139
    %p141 = pneg %p140
    // Predicated region
    $region9: #{_compute_losses.3} parent=5 // pred_check
      _
    $region10: #{_compute_losses.3} parent=5 // pred_check_branch
      %143 = sbr.rel (%p140) target = $region12
    $region11: #{_compute_losses.3} parent=5 // pred_region
      %s144 = ssub.s32 %s10, 1
    $region12: #{_compute_losses.3} parent=5 // pred_fallthru
      _
    %p145 = scmp.lt.s32.totalorder %s10, 2
    // Predicated region
    $region13: #{_compute_losses.3} parent=5 // pred_check
      %p146 = pneg %p145
    $region14: #{_compute_losses.3} parent=5 // pred_check_branch
      %148 = sbr.rel (%p146) target = $region16
    $region15: #{_compute_losses.3} parent=5 // pred_region
      // Predicated region
      $region17: #{_compute_losses.3} parent=15 // pred_check
        %p149 = pneg %p44
      $region18: #{_compute_losses.3} parent=15 // pred_check_branch
        %151 = sbr.rel (%p149) target = $region20
      $region19: #{_compute_losses.3} parent=15 // pred_region
        %s152 = smul.u32 8, %s17
        %s153 = smul.u32 2, %s18
        %p154 = scmp.lt.s32.totalorder %s152, 15
        %s155 = scalar_select %p154, %s152, 15
        %p156 = scmp.lt.s32.totalorder %s153, 1
        %s157 = scalar_select %p156, %s153, 1
        %s158 = smul.addr %s155, 2
        %s159 = sadd.s32 %s157, %s158
        %s160 = smul.addr %s159, 4
        %s161 = scalar_lea.vmem %s0, %s160
        %s162 = smul.u32 8, %s17
        %s163 = smul.u32 2, %s18
      $region20: #{_compute_losses.3} parent=15 // pred_fallthru
        _
      // Predicated region
      $region21: #{_compute_losses.3} parent=15 // pred_check
        %p164 = pneg %p72
      $region22: #{_compute_losses.3} parent=15 // pred_check_branch
        %166 = sbr.rel (%p164) target = $region24
      $region23: #{_compute_losses.3} parent=15 // pred_region
        %s167 = smul.u32 8, %s17
        %s168 = smul.u32 2, %s18
        %p169 = scmp.lt.s32.totalorder %s167, 15
        %s170 = scalar_select %p169, %s167, 15
        %p171 = scmp.lt.s32.totalorder %s168, 1
        %s172 = scalar_select %p171, %s168, 1
        %s173 = smul.addr %s170, 2
        %s174 = sadd.s32 %s172, %s173
        %s175 = smul.addr %s174, 4
        %s176 = scalar_lea.vmem %s1, %s175
        %s177 = smul.u32 8, %s17
        %s178 = smul.u32 2, %s18
      $region24: #{_compute_losses.3} parent=15 // pred_fallthru
        _
    $region16: #{_compute_losses.3} parent=5 // pred_fallthru
      _
    %p179 = scmp.le.s32.totalorder 1, %s10
    %p180 = scmp.lt.s32.totalorder %s10, 3
    %p181 = pnand %p179, %p180
    %p182 = pneg %p181
    // Predicated region
    $region25: #{_compute_losses.3} parent=5 // pred_check
      _
    $region26: #{_compute_losses.3} parent=5 // pred_check_branch
      %184 = sbr.rel (%p181) target = $region28
    $region27: #{_compute_losses.3} parent=5 // pred_region
      %s185 = ssub.s32 %s10, 1
      %s186 = smul.u32 8, %s19
      %s187 = smul.u32 2, %s20
      %p188 = scmp.lt.s32.totalorder %s186, 15
      %s189 = scalar_select %p188, %s186, 15
      %p190 = scmp.lt.s32.totalorder %s187, 1
      %s191 = scalar_select %p190, %s187, 1
      %s192 = smul.addr %s189, 2
      %s193 = sadd.s32 %s191, %s192
      %s194 = smul.addr %s193, 4
      %s195 = scalar_lea.vmem %s0, %s194
      %p196 = pneg %p50
      %p197 = pneg %p47
      %s198 = smul.u32 8, %s19
      %s199 = smul.u32 2, %s20
      %p200 = scmp.lt.s32.totalorder %s198, 15
      %s201 = scalar_select %p200, %s198, 15
      %p202 = scmp.lt.s32.totalorder %s199, 1
      %s203 = scalar_select %p202, %s199, 1
      %s204 = smul.addr %s201, 2
      %s205 = sadd.s32 %s203, %s204
      %s206 = smul.addr %s205, 4
      %s207 = scalar_lea.vmem %s1, %s206
      %p208 = pneg %p78
      %p209 = pneg %p75
      %p210 = pneg %p104
      %p211 = pneg %p101
      %s212 = smul.u32 8, %s19
      %p213 = scmp.lt.s32.totalorder %s212, 15
      %s214 = scalar_select %p213, %s212, 15
      %s215 = smul.addr %s214, 8
      %s216 = scalar_lea.vmem %s2, %s215
      %p217 = pneg %p130
      %p218 = pneg %p127
      %s219 = smul.u32 8, %s19
      %p220 = scmp.lt.s32.totalorder %s219, 15
      %s221 = scalar_select %p220, %s219, 15
      %s222 = smul.addr %s221, 8
      %s223 = scalar_lea.vmem %s3, %s222
      %s224 = smul.u32 8, %s19
      %s225 = smul.u32 2, %s20
      %p226 = scmp.lt.s32.totalorder %s224, 15
      %s227 = scalar_select %p226, %s224, 15
      %p228 = scmp.lt.s32.totalorder %s225, 1
      %s229 = scalar_select %p228, %s225, 1
      %s230 = smul.addr %s227, 2
      %s231 = sadd.s32 %s229, %s230
      %s232 = smul.addr %s231, 4
      %s233 = scalar_lea.vmem %s0, %s232
      %s234 = smul.u32 8, %s19
      %s235 = smul.u32 2, %s20
      %s236 = smul.u32 8, %s19
      %s237 = smul.u32 2, %s20
      %p238 = scmp.lt.s32.totalorder %s236, 15
      %s239 = scalar_select %p238, %s236, 15
      %p240 = scmp.lt.s32.totalorder %s237, 1
      %s241 = scalar_select %p240, %s237, 1
      %s242 = smul.addr %s239, 2
      %s243 = sadd.s32 %s241, %s242
      %s244 = smul.addr %s243, 4
      %s245 = scalar_lea.vmem %s1, %s244
      %s246 = smul.u32 8, %s19
      %s247 = smul.u32 2, %s20
      %s248 = smul.u32 8, %s19
      %p249 = scmp.lt.s32.totalorder %s248, 15
      %s250 = scalar_select %p249, %s248, 15
      %s251 = smul.addr %s250, 8
      %s252 = scalar_lea.vmem %s2, %s251
      %s253 = smul.u32 8, %s19
      %s254 = smul.u32 8, %s19
      %p255 = scmp.lt.s32.totalorder %s254, 15
      %s256 = scalar_select %p255, %s254, 15
      %s257 = smul.addr %s256, 8
      %s258 = scalar_lea.vmem %s3, %s257
      %s259 = smul.u32 8, %s19
      %p260 = scmp.eq.s32.totalorder %s20, 0
      // Predicated region
      $region29: #{_compute_losses.3} parent=27 // pred_check
        %p261 = pneg %p260
      $region30: #{_compute_losses.3} parent=27 // pred_check_branch
        %263 = sbr.rel (%p261) target = $region32
      $region31: #{_compute_losses.3} parent=27 // pred_region
        %264 = vst [vmem:[#allocation2] sm:$0xff] 0.0
        %265 = vst [vmem:[#allocation2 + $0x8] sm:$0xff] 0.0
        %266 = vst [vmem:[#allocation2 + $0x10] sm:$0xff] 0.0
        %267 = vst [vmem:[#allocation2 + $0x18] sm:$0xff] 0.0
        %268 = vst [vmem:[#allocation2 + $0x20] sm:$0xff] 0.0
        %269 = vst [vmem:[#allocation2 + $0x28] sm:$0xff] 0.0
        %270 = vst [vmem:[#allocation2 + $0x30] sm:$0xff] 0.0
        %271 = vst [vmem:[#allocation2 + $0x38] sm:$0xff] 0.0
        %272 = vst [vmem:[#allocation3] sm:$0xff] 0.0
        %273 = vst [vmem:[#allocation3 + $0x8] sm:$0xff] 0.0
        %274 = vst [vmem:[#allocation3 + $0x10] sm:$0xff] 0.0
        %275 = vst [vmem:[#allocation3 + $0x18] sm:$0xff] 0.0
        %276 = vst [vmem:[#allocation3 + $0x20] sm:$0xff] 0.0
        %277 = vst [vmem:[#allocation3 + $0x28] sm:$0xff] 0.0
        %278 = vst [vmem:[#allocation3 + $0x30] sm:$0xff] 0.0
        %279 = vst [vmem:[#allocation3 + $0x38] sm:$0xff] 0.0
        %280 = vst [vmem:[#allocation4] sm:$0xff] 0.0
        %281 = vst [vmem:[#allocation4 + $0x8] sm:$0xff] 0.0
        %282 = vst [vmem:[#allocation4 + $0x10] sm:$0xff] 0.0
        %283 = vst [vmem:[#allocation4 + $0x18] sm:$0xff] 0.0
        %284 = vst [vmem:[#allocation4 + $0x20] sm:$0xff] 0.0
        %285 = vst [vmem:[#allocation4 + $0x28] sm:$0xff] 0.0
        %286 = vst [vmem:[#allocation4 + $0x30] sm:$0xff] 0.0
        %287 = vst [vmem:[#allocation4 + $0x38] sm:$0xff] 0.0
        %288 = vst [vmem:[#allocation5] sm:$0xff] 0.0
        %289 = vst [vmem:[#allocation5 + $0x8] sm:$0xff] 0.0
        %290 = vst [vmem:[#allocation5 + $0x10] sm:$0xff] 0.0
        %291 = vst [vmem:[#allocation5 + $0x18] sm:$0xff] 0.0
        %292 = vst [vmem:[#allocation5 + $0x20] sm:$0xff] 0.0
        %293 = vst [vmem:[#allocation5 + $0x28] sm:$0xff] 0.0
        %294 = vst [vmem:[#allocation5 + $0x30] sm:$0xff] 0.0
        %295 = vst [vmem:[#allocation5 + $0x38] sm:$0xff] 0.0
      $region32: #{_compute_losses.3} parent=27 // pred_fallthru
        _
      %v296 = vld [vmem:[%s233] sm:$0xff]
      %v297 = vld [vmem:[%s233 + $0x8] sm:$0xff]
      %v298 = vld [vmem:[%s233 + $0x10] sm:$0xff]
      %v299 = vld [vmem:[%s233 + $0x18] sm:$0xff]
      %v300 = vld [vmem:[%s233 + $0x20] sm:$0xff]
      %v301 = vld [vmem:[%s233 + $0x28] sm:$0xff]
      %v302 = vld [vmem:[%s233 + $0x30] sm:$0xff]
      %v303 = vld [vmem:[%s233 + $0x38] sm:$0xff]
      %v304 = vunpack.c.l.bf16 %v296
      %v305 = vunpack.c.h.bf16 %v296
      %v306 = vunpack.c.l.bf16 %v297
      %v307 = vunpack.c.h.bf16 %v297
      %v308 = vunpack.c.l.bf16 %v298
      %v309 = vunpack.c.h.bf16 %v298
      %v310 = vunpack.c.l.bf16 %v299
      %v311 = vunpack.c.h.bf16 %v299
      %v312 = vunpack.c.l.bf16 %v300
      %v313 = vunpack.c.h.bf16 %v300
      %v314 = vunpack.c.l.bf16 %v301
      %v315 = vunpack.c.h.bf16 %v301
      %v316 = vunpack.c.l.bf16 %v302
      %v317 = vunpack.c.h.bf16 %v302
      %v318 = vunpack.c.l.bf16 %v303
      %v319 = vunpack.c.h.bf16 %v303
      %v320 = vld [vmem:[%s245] sm:$0xff]
      %v321 = vld [vmem:[%s245 + $0x8] sm:$0xff]
      %v322 = vld [vmem:[%s245 + $0x10] sm:$0xff]
      %v323 = vld [vmem:[%s245 + $0x18] sm:$0xff]
      %v324 = vld [vmem:[%s245 + $0x20] sm:$0xff]
      %v325 = vld [vmem:[%s245 + $0x28] sm:$0xff]
      %v326 = vld [vmem:[%s245 + $0x30] sm:$0xff]
      %v327 = vld [vmem:[%s245 + $0x38] sm:$0xff]
      %v328 = vunpack.c.l.bf16 %v320
      %v329 = vunpack.c.h.bf16 %v320
      %v330 = vunpack.c.l.bf16 %v321
      %v331 = vunpack.c.h.bf16 %v321
      %v332 = vunpack.c.l.bf16 %v322
      %v333 = vunpack.c.h.bf16 %v322
      %v334 = vunpack.c.l.bf16 %v323
      %v335 = vunpack.c.h.bf16 %v323
      %v336 = vunpack.c.l.bf16 %v324
      %v337 = vunpack.c.h.bf16 %v324
      %v338 = vunpack.c.l.bf16 %v325
      %v339 = vunpack.c.h.bf16 %v325
      %v340 = vunpack.c.l.bf16 %v326
      %v341 = vunpack.c.h.bf16 %v326
      %v342 = vunpack.c.l.bf16 %v327
      %v343 = vunpack.c.h.bf16 %v327
      %v344 = vand.u32 2147483647, %v304
      %v345 = vand.u32 2147483647, %v305
      %v346 = vand.u32 2147483647, %v306
      %v347 = vand.u32 2147483647, %v307
      %v348 = vand.u32 2147483647, %v308
      %v349 = vand.u32 2147483647, %v309
      %v350 = vand.u32 2147483647, %v310
      %v351 = vand.u32 2147483647, %v311
      %v352 = vand.u32 2147483647, %v312
      %v353 = vand.u32 2147483647, %v313
      %v354 = vand.u32 2147483647, %v314
      %v355 = vand.u32 2147483647, %v315
      %v356 = vand.u32 2147483647, %v316
      %v357 = vand.u32 2147483647, %v317
      %v358 = vand.u32 2147483647, %v318
      %v359 = vand.u32 2147483647, %v319
      %v360 = vsub.f32 0.0, %v344
      %v361 = vsub.f32 0.0, %v345
      %v362 = vsub.f32 0.0, %v346
      %v363 = vsub.f32 0.0, %v347
      %v364 = vsub.f32 0.0, %v348
      %v365 = vsub.f32 0.0, %v349
      %v366 = vsub.f32 0.0, %v350
      %v367 = vsub.f32 0.0, %v351
      %v368 = vsub.f32 0.0, %v352
      %v369 = vsub.f32 0.0, %v353
      %v370 = vsub.f32 0.0, %v354
      %v371 = vsub.f32 0.0, %v355
      %v372 = vsub.f32 0.0, %v356
      %v373 = vsub.f32 0.0, %v357
      %v374 = vsub.f32 0.0, %v358
      %v375 = vsub.f32 0.0, %v359
      %v376 = vmul.f32 %v360, 1.442695
      %v377 = vpow.pop %v376
      %v378 = vmul.f32 %v361, 1.442695
      %v379 = vpow.pop %v378
      %v380 = vmul.f32 %v362, 1.442695
      %v381 = vpow.pop %v380
      %v382 = vmul.f32 %v363, 1.442695
      %v383 = vpow.pop %v382
      %v384 = vmul.f32 %v364, 1.442695
      %v385 = vpow.pop %v384
      %v386 = vmul.f32 %v365, 1.442695
      %v387 = vpow.pop %v386
      %v388 = vmul.f32 %v366, 1.442695
      %v389 = vpow.pop %v388
      %v390 = vmul.f32 %v367, 1.442695
      %v391 = vpow.pop %v390
      %v392 = vmul.f32 %v368, 1.442695
      %v393 = vpow.pop %v392
      %v394 = vmul.f32 %v369, 1.442695
      %v395 = vpow.pop %v394
      %v396 = vmul.f32 %v370, 1.442695
      %v397 = vpow.pop %v396
      %v398 = vmul.f32 %v371, 1.442695
      %v399 = vpow.pop %v398
      %v400 = vmul.f32 %v372, 1.442695
      %v401 = vpow.pop %v400
      %v402 = vmul.f32 %v373, 1.442695
      %v403 = vpow.pop %v402
      %v404 = vmul.f32 %v374, 1.442695
      %v405 = vpow.pop %v404
      %v406 = vmul.f32 %v375, 1.442695
      %v407 = vpow.pop %v406
      %v408 = vadd.f32 %v377, 1.0
      %v409 = vadd.f32 %v379, 1.0
      %v410 = vadd.f32 %v381, 1.0
      %v411 = vadd.f32 %v383, 1.0
      %v412 = vadd.f32 %v385, 1.0
      %v413 = vadd.f32 %v387, 1.0
      %v414 = vadd.f32 %v389, 1.0
      %v415 = vadd.f32 %v391, 1.0
      %v416 = vadd.f32 %v393, 1.0
      %v417 = vadd.f32 %v395, 1.0
      %v418 = vadd.f32 %v397, 1.0
      %v419 = vadd.f32 %v399, 1.0
      %v420 = vadd.f32 %v401, 1.0
      %v421 = vadd.f32 %v403, 1.0
      %v422 = vadd.f32 %v405, 1.0
      %v423 = vadd.f32 %v407, 1.0
      %v424 = vmax.f32 %v304, 0.0
      %v425 = vmax.f32 %v305, 0.0
      %v426 = vmax.f32 %v306, 0.0
      %v427 = vmax.f32 %v307, 0.0
      %v428 = vmax.f32 %v308, 0.0
      %v429 = vmax.f32 %v309, 0.0
      %v430 = vmax.f32 %v310, 0.0
      %v431 = vmax.f32 %v311, 0.0
      %v432 = vmax.f32 %v312, 0.0
      %v433 = vmax.f32 %v313, 0.0
      %v434 = vmax.f32 %v314, 0.0
      %v435 = vmax.f32 %v315, 0.0
      %v436 = vmax.f32 %v316, 0.0
      %v437 = vmax.f32 %v317, 0.0
      %v438 = vmax.f32 %v318, 0.0
      %v439 = vmax.f32 %v319, 0.0
      %v440 = vlog2.pop %v408
      %v441 = vmul.f32 %v440, 0.6931472
      %v442 = vlog2.pop %v409
      %v443 = vmul.f32 %v442, 0.6931472
      %v444 = vlog2.pop %v410
      %v445 = vmul.f32 %v444, 0.6931472
      %v446 = vlog2.pop %v411
      %v447 = vmul.f32 %v446, 0.6931472
      %v448 = vlog2.pop %v412
      %v449 = vmul.f32 %v448, 0.6931472
      %v450 = vlog2.pop %v413
      %v451 = vmul.f32 %v450, 0.6931472
      %v452 = vlog2.pop %v414
      %v453 = vmul.f32 %v452, 0.6931472
      %v454 = vlog2.pop %v415
      %v455 = vmul.f32 %v454, 0.6931472
      %v456 = vlog2.pop %v416
      %v457 = vmul.f32 %v456, 0.6931472
      %v458 = vlog2.pop %v417
      %v459 = vmul.f32 %v458, 0.6931472
      %v460 = vlog2.pop %v418
      %v461 = vmul.f32 %v460, 0.6931472
      %v462 = vlog2.pop %v419
      %v463 = vmul.f32 %v462, 0.6931472
      %v464 = vlog2.pop %v420
      %v465 = vmul.f32 %v464, 0.6931472
      %v466 = vlog2.pop %v421
      %v467 = vmul.f32 %v466, 0.6931472
      %v468 = vlog2.pop %v422
      %v469 = vmul.f32 %v468, 0.6931472
      %v470 = vlog2.pop %v423
      %v471 = vmul.f32 %v470, 0.6931472
      %v472 = vadd.f32 %v424, %v441
      %v473 = vadd.f32 %v425, %v443
      %v474 = vadd.f32 %v426, %v445
      %v475 = vadd.f32 %v427, %v447
      %v476 = vadd.f32 %v428, %v449
      %v477 = vadd.f32 %v429, %v451
      %v478 = vadd.f32 %v430, %v453
      %v479 = vadd.f32 %v431, %v455
      %v480 = vadd.f32 %v432, %v457
      %v481 = vadd.f32 %v433, %v459
      %v482 = vadd.f32 %v434, %v461
      %v483 = vadd.f32 %v435, %v463
      %v484 = vadd.f32 %v436, %v465
      %v485 = vadd.f32 %v437, %v467
      %v486 = vadd.f32 %v438, %v469
      %v487 = vadd.f32 %v439, %v471
      %vm488 = vcmp.ge.f32.partialorder %v304, 0.0
      %vm489 = vcmp.ge.f32.partialorder %v305, 0.0
      %vm490 = vcmp.ge.f32.partialorder %v306, 0.0
      %vm491 = vcmp.ge.f32.partialorder %v307, 0.0
      %vm492 = vcmp.ge.f32.partialorder %v308, 0.0
      %vm493 = vcmp.ge.f32.partialorder %v309, 0.0
      %vm494 = vcmp.ge.f32.partialorder %v310, 0.0
      %vm495 = vcmp.ge.f32.partialorder %v311, 0.0
      %vm496 = vcmp.ge.f32.partialorder %v312, 0.0
      %vm497 = vcmp.ge.f32.partialorder %v313, 0.0
      %vm498 = vcmp.ge.f32.partialorder %v314, 0.0
      %vm499 = vcmp.ge.f32.partialorder %v315, 0.0
      %vm500 = vcmp.ge.f32.partialorder %v316, 0.0
      %vm501 = vcmp.ge.f32.partialorder %v317, 0.0
      %vm502 = vcmp.ge.f32.partialorder %v318, 0.0
      %vm503 = vcmp.ge.f32.partialorder %v319, 0.0
      %v504 = vsel %vm488, 1.0, %v377
      %v505 = vsel %vm489, 1.0, %v379
      %v506 = vsel %vm490, 1.0, %v381
      %v507 = vsel %vm491, 1.0, %v383
      %v508 = vsel %vm492, 1.0, %v385
      %v509 = vsel %vm493, 1.0, %v387
      %v510 = vsel %vm494, 1.0, %v389
      %v511 = vsel %vm495, 1.0, %v391
      %v512 = vsel %vm496, 1.0, %v393
      %v513 = vsel %vm497, 1.0, %v395
      %v514 = vsel %vm498, 1.0, %v397
      %v515 = vsel %vm499, 1.0, %v399
      %v516 = vsel %vm500, 1.0, %v401
      %v517 = vsel %vm501, 1.0, %v403
      %v518 = vsel %vm502, 1.0, %v405
      %v519 = vsel %vm503, 1.0, %v407
      %v520 = vrcp.pop %v408
      %v521 = vrcp.pop %v409
      %v522 = vrcp.pop %v410
      %v523 = vrcp.pop %v411
      %v524 = vrcp.pop %v412
      %v525 = vrcp.pop %v413
      %v526 = vrcp.pop %v414
      %v527 = vrcp.pop %v415
      %v528 = vrcp.pop %v416
      %v529 = vrcp.pop %v417
      %v530 = vrcp.pop %v418
      %v531 = vrcp.pop %v419
      %v532 = vrcp.pop %v420
      %v533 = vrcp.pop %v421
      %v534 = vrcp.pop %v422
      %v535 = vrcp.pop %v423
      %v536 = vmul.f32 %v504, %v520
      %v537 = vmul.f32 %v505, %v521
      %v538 = vmul.f32 %v506, %v522
      %v539 = vmul.f32 %v507, %v523
      %v540 = vmul.f32 %v508, %v524
      %v541 = vmul.f32 %v509, %v525
      %v542 = vmul.f32 %v510, %v526
      %v543 = vmul.f32 %v511, %v527
      %v544 = vmul.f32 %v512, %v528
      %v545 = vmul.f32 %v513, %v529
      %v546 = vmul.f32 %v514, %v530
      %v547 = vmul.f32 %v515, %v531
      %v548 = vmul.f32 %v516, %v532
      %v549 = vmul.f32 %v517, %v533
      %v550 = vmul.f32 %v518, %v534
      %v551 = vmul.f32 %v519, %v535
      %v552 = vmul.f32 %v328, %v304
      %v553 = vmul.f32 %v329, %v305
      %v554 = vmul.f32 %v330, %v306
      %v555 = vmul.f32 %v331, %v307
      %v556 = vmul.f32 %v332, %v308
      %v557 = vmul.f32 %v333, %v309
      %v558 = vmul.f32 %v334, %v310
      %v559 = vmul.f32 %v335, %v311
      %v560 = vmul.f32 %v336, %v312
      %v561 = vmul.f32 %v337, %v313
      %v562 = vmul.f32 %v338, %v314
      %v563 = vmul.f32 %v339, %v315
      %v564 = vmul.f32 %v340, %v316
      %v565 = vmul.f32 %v341, %v317
      %v566 = vmul.f32 %v342, %v318
      %v567 = vmul.f32 %v343, %v319
      %v568 = vsub.f32 %v472, %v552
      %v569 = vsub.f32 %v473, %v553
      %v570 = vsub.f32 %v474, %v554
      %v571 = vsub.f32 %v475, %v555
      %v572 = vsub.f32 %v476, %v556
      %v573 = vsub.f32 %v477, %v557
      %v574 = vsub.f32 %v478, %v558
      %v575 = vsub.f32 %v479, %v559
      %v576 = vsub.f32 %v480, %v560
      %v577 = vsub.f32 %v481, %v561
      %v578 = vsub.f32 %v482, %v562
      %v579 = vsub.f32 %v483, %v563
      %v580 = vsub.f32 %v484, %v564
      %v581 = vsub.f32 %v485, %v565
      %v582 = vsub.f32 %v486, %v566
      %v583 = vsub.f32 %v487, %v567
      %v584 = vsub.f32 %v328, %v536
      %v585 = vsub.f32 %v329, %v537
      %v586 = vsub.f32 %v330, %v538
      %v587 = vsub.f32 %v331, %v539
      %v588 = vsub.f32 %v332, %v540
      %v589 = vsub.f32 %v333, %v541
      %v590 = vsub.f32 %v334, %v542
      %v591 = vsub.f32 %v335, %v543
      %v592 = vsub.f32 %v336, %v544
      %v593 = vsub.f32 %v337, %v545
      %v594 = vsub.f32 %v338, %v546
      %v595 = vsub.f32 %v339, %v547
      %v596 = vsub.f32 %v340, %v548
      %v597 = vsub.f32 %v341, %v549
      %v598 = vsub.f32 %v342, %v550
      %v599 = vsub.f32 %v343, %v551
      %v600 = vmul.f32 %v328, -0.5
      %v601 = vmul.f32 %v329, -0.5
      %v602 = vmul.f32 %v330, -0.5
      %v603 = vmul.f32 %v331, -0.5
      %v604 = vmul.f32 %v332, -0.5
      %v605 = vmul.f32 %v333, -0.5
      %v606 = vmul.f32 %v334, -0.5
      %v607 = vmul.f32 %v335, -0.5
      %v608 = vmul.f32 %v336, -0.5
      %v609 = vmul.f32 %v337, -0.5
      %v610 = vmul.f32 %v338, -0.5
      %v611 = vmul.f32 %v339, -0.5
      %v612 = vmul.f32 %v340, -0.5
      %v613 = vmul.f32 %v341, -0.5
      %v614 = vmul.f32 %v342, -0.5
      %v615 = vmul.f32 %v343, -0.5
      %v616 = vadd.f32 %v600, 0.75
      %v617 = vadd.f32 %v601, 0.75
      %v618 = vadd.f32 %v602, 0.75
      %v619 = vadd.f32 %v603, 0.75
      %v620 = vadd.f32 %v604, 0.75
      %v621 = vadd.f32 %v605, 0.75
      %v622 = vadd.f32 %v606, 0.75
      %v623 = vadd.f32 %v607, 0.75
      %v624 = vadd.f32 %v608, 0.75
      %v625 = vadd.f32 %v609, 0.75
      %v626 = vadd.f32 %v610, 0.75
      %v627 = vadd.f32 %v611, 0.75
      %v628 = vadd.f32 %v612, 0.75
      %v629 = vadd.f32 %v613, 0.75
      %v630 = vadd.f32 %v614, 0.75
      %v631 = vadd.f32 %v615, 0.75
      %v632 = vmul.f32 %v616, %v568
      %v633 = vmul.f32 %v617, %v569
      %v634 = vmul.f32 %v618, %v570
      %v635 = vmul.f32 %v619, %v571
      %v636 = vmul.f32 %v620, %v572
      %v637 = vmul.f32 %v621, %v573
      %v638 = vmul.f32 %v622, %v574
      %v639 = vmul.f32 %v623, %v575
      %v640 = vmul.f32 %v624, %v576
      %v641 = vmul.f32 %v625, %v577
      %v642 = vmul.f32 %v626, %v578
      %v643 = vmul.f32 %v627, %v579
      %v644 = vmul.f32 %v628, %v580
      %v645 = vmul.f32 %v629, %v581
      %v646 = vmul.f32 %v630, %v582
      %v647 = vmul.f32 %v631, %v583
      %v648 = vmul.f32 %v584, %v584
      %v649 = vmul.f32 %v585, %v585
      %v650 = vmul.f32 %v586, %v586
      %v651 = vmul.f32 %v587, %v587
      %v652 = vmul.f32 %v588, %v588
      %v653 = vmul.f32 %v589, %v589
      %v654 = vmul.f32 %v590, %v590
      %v655 = vmul.f32 %v591, %v591
      %v656 = vmul.f32 %v592, %v592
      %v657 = vmul.f32 %v593, %v593
      %v658 = vmul.f32 %v594, %v594
      %v659 = vmul.f32 %v595, %v595
      %v660 = vmul.f32 %v596, %v596
      %v661 = vmul.f32 %v597, %v597
      %v662 = vmul.f32 %v598, %v598
      %v663 = vmul.f32 %v599, %v599
      %v664 = vmul.f32 %v632, %v648
      %v665 = vmul.f32 %v633, %v649
      %v666 = vmul.f32 %v634, %v650
      %v667 = vmul.f32 %v635, %v651
      %v668 = vmul.f32 %v636, %v652
      %v669 = vmul.f32 %v637, %v653
      %v670 = vmul.f32 %v638, %v654
      %v671 = vmul.f32 %v639, %v655
      %v672 = vmul.f32 %v640, %v656
      %v673 = vmul.f32 %v641, %v657
      %v674 = vmul.f32 %v642, %v658
      %v675 = vmul.f32 %v643, %v659
      %v676 = vmul.f32 %v644, %v660
      %v677 = vmul.f32 %v645, %v661
      %v678 = vmul.f32 %v646, %v662
      %v679 = vmul.f32 %v647, %v663
      %v680 = vld [vmem:[#allocation2] sm:$0xff]
      %v681 = vld [vmem:[#allocation2 + $0x8] sm:$0xff]
      %v682 = vld [vmem:[#allocation2 + $0x10] sm:$0xff]
      %v683 = vld [vmem:[#allocation2 + $0x18] sm:$0xff]
      %v684 = vld [vmem:[#allocation2 + $0x20] sm:$0xff]
      %v685 = vld [vmem:[#allocation2 + $0x28] sm:$0xff]
      %v686 = vld [vmem:[#allocation2 + $0x30] sm:$0xff]
      %v687 = vld [vmem:[#allocation2 + $0x38] sm:$0xff]
      %v688 = vadd.f32 %v664, %v665
      %v689 = vadd.f32 %v666, %v667
      %v690 = vadd.f32 %v668, %v669
      %v691 = vadd.f32 %v670, %v671
      %v692 = vadd.f32 %v672, %v673
      %v693 = vadd.f32 %v674, %v675
      %v694 = vadd.f32 %v676, %v677
      %v695 = vadd.f32 %v678, %v679
      %v696 = vadd.f32 %v680, %v688
      %v697 = vadd.f32 %v681, %v689
      %v698 = vadd.f32 %v682, %v690
      %v699 = vadd.f32 %v683, %v691
      %v700 = vadd.f32 %v684, %v692
      %v701 = vadd.f32 %v685, %v693
      %v702 = vadd.f32 %v686, %v694
      %v703 = vadd.f32 %v687, %v695
      %704 = vst [vmem:[#allocation2] sm:$0xff] %v696
      %705 = vst [vmem:[#allocation2 + $0x8] sm:$0xff] %v697
      %706 = vst [vmem:[#allocation2 + $0x10] sm:$0xff] %v698
      %707 = vst [vmem:[#allocation2 + $0x18] sm:$0xff] %v699
      %708 = vst [vmem:[#allocation2 + $0x20] sm:$0xff] %v700
      %709 = vst [vmem:[#allocation2 + $0x28] sm:$0xff] %v701
      %710 = vst [vmem:[#allocation2 + $0x30] sm:$0xff] %v702
      %711 = vst [vmem:[#allocation2 + $0x38] sm:$0xff] %v703
      %v712 = vld [vmem:[#allocation3] sm:$0xff]
      %v713 = vld [vmem:[#allocation3 + $0x8] sm:$0xff]
      %v714 = vld [vmem:[#allocation3 + $0x10] sm:$0xff]
      %v715 = vld [vmem:[#allocation3 + $0x18] sm:$0xff]
      %v716 = vld [vmem:[#allocation3 + $0x20] sm:$0xff]
      %v717 = vld [vmem:[#allocation3 + $0x28] sm:$0xff]
      %v718 = vld [vmem:[#allocation3 + $0x30] sm:$0xff]
      %v719 = vld [vmem:[#allocation3 + $0x38] sm:$0xff]
      %v720 = vmul.f32 %v536, %v328
      %v721 = vmul.f32 %v537, %v329
      %v722 = vmul.f32 %v538, %v330
      %v723 = vmul.f32 %v539, %v331
      %v724 = vmul.f32 %v540, %v332
      %v725 = vmul.f32 %v541, %v333
      %v726 = vmul.f32 %v542, %v334
      %v727 = vmul.f32 %v543, %v335
      %v728 = vmul.f32 %v544, %v336
      %v729 = vmul.f32 %v545, %v337
      %v730 = vmul.f32 %v546, %v338
      %v731 = vmul.f32 %v547, %v339
      %v732 = vmul.f32 %v548, %v340
      %v733 = vmul.f32 %v549, %v341
      %v734 = vmul.f32 %v550, %v342
      %v735 = vmul.f32 %v551, %v343
      %v736 = vadd.f32 %v720, %v721
      %v737 = vadd.f32 %v722, %v723
      %v738 = vadd.f32 %v724, %v725
      %v739 = vadd.f32 %v726, %v727
      %v740 = vadd.f32 %v728, %v729
      %v741 = vadd.f32 %v730, %v731
      %v742 = vadd.f32 %v732, %v733
      %v743 = vadd.f32 %v734, %v735
      %v744 = vadd.f32 %v712, %v736
      %v745 = vadd.f32 %v713, %v737
      %v746 = vadd.f32 %v714, %v738
      %v747 = vadd.f32 %v715, %v739
      %v748 = vadd.f32 %v716, %v740
      %v749 = vadd.f32 %v717, %v741
      %v750 = vadd.f32 %v718, %v742
      %v751 = vadd.f32 %v719, %v743
      %752 = vst [vmem:[#allocation3] sm:$0xff] %v744
      %753 = vst [vmem:[#allocation3 + $0x8] sm:$0xff] %v745
      %754 = vst [vmem:[#allocation3 + $0x10] sm:$0xff] %v746
      %755 = vst [vmem:[#allocation3 + $0x18] sm:$0xff] %v747
      %756 = vst [vmem:[#allocation3 + $0x20] sm:$0xff] %v748
      %757 = vst [vmem:[#allocation3 + $0x28] sm:$0xff] %v749
      %758 = vst [vmem:[#allocation3 + $0x30] sm:$0xff] %v750
      %759 = vst [vmem:[#allocation3 + $0x38] sm:$0xff] %v751
      %v760 = vld [vmem:[#allocation4] sm:$0xff]
      %v761 = vld [vmem:[#allocation4 + $0x8] sm:$0xff]
      %v762 = vld [vmem:[#allocation4 + $0x10] sm:$0xff]
      %v763 = vld [vmem:[#allocation4 + $0x18] sm:$0xff]
      %v764 = vld [vmem:[#allocation4 + $0x20] sm:$0xff]
      %v765 = vld [vmem:[#allocation4 + $0x28] sm:$0xff]
      %v766 = vld [vmem:[#allocation4 + $0x30] sm:$0xff]
      %v767 = vld [vmem:[#allocation4 + $0x38] sm:$0xff]
      %v768 = vadd.f32 %v536, %v537
      %v769 = vadd.f32 %v538, %v539
      %v770 = vadd.f32 %v540, %v541
      %v771 = vadd.f32 %v542, %v543
      %v772 = vadd.f32 %v544, %v545
      %v773 = vadd.f32 %v546, %v547
      %v774 = vadd.f32 %v548, %v549
      %v775 = vadd.f32 %v550, %v551
      %v776 = vadd.f32 %v760, %v768
      %v777 = vadd.f32 %v761, %v769
      %v778 = vadd.f32 %v762, %v770
      %v779 = vadd.f32 %v763, %v771
      %v780 = vadd.f32 %v764, %v772
      %v781 = vadd.f32 %v765, %v773
      %v782 = vadd.f32 %v766, %v774
      %v783 = vadd.f32 %v767, %v775
      %784 = vst [vmem:[#allocation4] sm:$0xff] %v776
      %785 = vst [vmem:[#allocation4 + $0x8] sm:$0xff] %v777
      %786 = vst [vmem:[#allocation4 + $0x10] sm:$0xff] %v778
      %787 = vst [vmem:[#allocation4 + $0x18] sm:$0xff] %v779
      %788 = vst [vmem:[#allocation4 + $0x20] sm:$0xff] %v780
      %789 = vst [vmem:[#allocation4 + $0x28] sm:$0xff] %v781
      %790 = vst [vmem:[#allocation4 + $0x30] sm:$0xff] %v782
      %791 = vst [vmem:[#allocation4 + $0x38] sm:$0xff] %v783
      %v792 = vld [vmem:[#allocation5] sm:$0xff]
      %v793 = vld [vmem:[#allocation5 + $0x8] sm:$0xff]
      %v794 = vld [vmem:[#allocation5 + $0x10] sm:$0xff]
      %v795 = vld [vmem:[#allocation5 + $0x18] sm:$0xff]
      %v796 = vld [vmem:[#allocation5 + $0x20] sm:$0xff]
      %v797 = vld [vmem:[#allocation5 + $0x28] sm:$0xff]
      %v798 = vld [vmem:[#allocation5 + $0x30] sm:$0xff]
      %v799 = vld [vmem:[#allocation5 + $0x38] sm:$0xff]
      %v800 = vadd.f32 %v328, %v329
      %v801 = vadd.f32 %v330, %v331
      %v802 = vadd.f32 %v332, %v333
      %v803 = vadd.f32 %v334, %v335
      %v804 = vadd.f32 %v336, %v337
      %v805 = vadd.f32 %v338, %v339
      %v806 = vadd.f32 %v340, %v341
      %v807 = vadd.f32 %v342, %v343
      %v808 = vadd.f32 %v792, %v800
      %v809 = vadd.f32 %v793, %v801
      %v810 = vadd.f32 %v794, %v802
      %v811 = vadd.f32 %v795, %v803
      %v812 = vadd.f32 %v796, %v804
      %v813 = vadd.f32 %v797, %v805
      %v814 = vadd.f32 %v798, %v806
      %v815 = vadd.f32 %v799, %v807
      %816 = vst [vmem:[#allocation5] sm:$0xff] %v808
      %817 = vst [vmem:[#allocation5 + $0x8] sm:$0xff] %v809
      %818 = vst [vmem:[#allocation5 + $0x10] sm:$0xff] %v810
      %819 = vst [vmem:[#allocation5 + $0x18] sm:$0xff] %v811
      %820 = vst [vmem:[#allocation5 + $0x20] sm:$0xff] %v812
      %821 = vst [vmem:[#allocation5 + $0x28] sm:$0xff] %v813
      %822 = vst [vmem:[#allocation5 + $0x30] sm:$0xff] %v814
      %823 = vst [vmem:[#allocation5 + $0x38] sm:$0xff] %v815
      // Predicated region
      $region33: #{_compute_losses.3} parent=27 // pred_check
        %p824 = pneg %p260
      $region34: #{_compute_losses.3} parent=27 // pred_check_branch
        %826 = sbr.rel (%p824) target = $region36
      $region35: #{_compute_losses.3} parent=27 // pred_region
        %v827 = vld [vmem:[#allocation2] sm:$0xff]
        %v828 = vld [vmem:[#allocation2 + $0x8] sm:$0xff]
        %v829 = vld [vmem:[#allocation2 + $0x10] sm:$0xff]
        %v830 = vld [vmem:[#allocation2 + $0x18] sm:$0xff]
        %v831 = vld [vmem:[#allocation2 + $0x20] sm:$0xff]
        %v832 = vld [vmem:[#allocation2 + $0x28] sm:$0xff]
        %v833 = vld [vmem:[#allocation2 + $0x30] sm:$0xff]
        %v834 = vld [vmem:[#allocation2 + $0x38] sm:$0xff]
        %835 = vadd.xlane.f32.xlu0 %v827
        %v836 = vpop.xlane.xlu0 %835
        %837 = vadd.xlane.f32.xlu0 %v828
        %v838 = vpop.xlane.xlu0 %837
        %839 = vadd.xlane.f32.xlu0 %v829
        %v840 = vpop.xlane.xlu0 %839
        %841 = vadd.xlane.f32.xlu0 %v830
        %v842 = vpop.xlane.xlu0 %841
        %843 = vadd.xlane.f32.xlu0 %v831
        %v844 = vpop.xlane.xlu0 %843
        %845 = vadd.xlane.f32.xlu0 %v832
        %v846 = vpop.xlane.xlu0 %845
        %847 = vadd.xlane.f32.xlu0 %v833
        %v848 = vpop.xlane.xlu0 %847
        %849 = vadd.xlane.f32.xlu0 %v834
        %v850 = vpop.xlane.xlu0 %849
        %vm851 = vcmask 7168
        %852 = vst.msk [vmem:[%s252] sm:$0xff] %vm851, %v836
        %853 = vst.msk [vmem:[%s252 + $0x8] sm:$0xff] %vm851, %v838
        %854 = vst.msk [vmem:[%s252 + $0x10] sm:$0xff] %vm851, %v840
        %855 = vst.msk [vmem:[%s252 + $0x18] sm:$0xff] %vm851, %v842
        %856 = vst.msk [vmem:[%s252 + $0x20] sm:$0xff] %vm851, %v844
        %857 = vst.msk [vmem:[%s252 + $0x28] sm:$0xff] %vm851, %v846
        %858 = vst.msk [vmem:[%s252 + $0x30] sm:$0xff] %vm851, %v848
        %859 = vst.msk [vmem:[%s252 + $0x38] sm:$0xff] %vm851, %v850
        %v860 = vld [vmem:[#allocation3] sm:$0xff]
        %v861 = vld [vmem:[#allocation3 + $0x8] sm:$0xff]
        %v862 = vld [vmem:[#allocation3 + $0x10] sm:$0xff]
        %v863 = vld [vmem:[#allocation3 + $0x18] sm:$0xff]
        %v864 = vld [vmem:[#allocation3 + $0x20] sm:$0xff]
        %v865 = vld [vmem:[#allocation3 + $0x28] sm:$0xff]
        %v866 = vld [vmem:[#allocation3 + $0x30] sm:$0xff]
        %v867 = vld [vmem:[#allocation3 + $0x38] sm:$0xff]
        %868 = vadd.xlane.f32.xlu0 %v860
        %v869 = vpop.xlane.xlu0 %868
        %870 = vadd.xlane.f32.xlu0 %v861
        %v871 = vpop.xlane.xlu0 %870
        %872 = vadd.xlane.f32.xlu0 %v862
        %v873 = vpop.xlane.xlu0 %872
        %874 = vadd.xlane.f32.xlu0 %v863
        %v875 = vpop.xlane.xlu0 %874
        %876 = vadd.xlane.f32.xlu0 %v864
        %v877 = vpop.xlane.xlu0 %876
        %878 = vadd.xlane.f32.xlu0 %v865
        %v879 = vpop.xlane.xlu0 %878
        %880 = vadd.xlane.f32.xlu0 %v866
        %v881 = vpop.xlane.xlu0 %880
        %882 = vadd.xlane.f32.xlu0 %v867
        %v883 = vpop.xlane.xlu0 %882
        %v884 = vld [vmem:[#allocation4] sm:$0xff]
        %v885 = vld [vmem:[#allocation4 + $0x8] sm:$0xff]
        %v886 = vld [vmem:[#allocation4 + $0x10] sm:$0xff]
        %v887 = vld [vmem:[#allocation4 + $0x18] sm:$0xff]
        %v888 = vld [vmem:[#allocation4 + $0x20] sm:$0xff]
        %v889 = vld [vmem:[#allocation4 + $0x28] sm:$0xff]
        %v890 = vld [vmem:[#allocation4 + $0x30] sm:$0xff]
        %v891 = vld [vmem:[#allocation4 + $0x38] sm:$0xff]
        %892 = vadd.xlane.f32.xlu0 %v884
        %v893 = vpop.xlane.xlu0 %892
        %894 = vadd.xlane.f32.xlu0 %v885
        %v895 = vpop.xlane.xlu0 %894
        %896 = vadd.xlane.f32.xlu0 %v886
        %v897 = vpop.xlane.xlu0 %896
        %898 = vadd.xlane.f32.xlu0 %v887
        %v899 = vpop.xlane.xlu0 %898
        %900 = vadd.xlane.f32.xlu0 %v888
        %v901 = vpop.xlane.xlu0 %900
        %902 = vadd.xlane.f32.xlu0 %v889
        %v903 = vpop.xlane.xlu0 %902
        %904 = vadd.xlane.f32.xlu0 %v890
        %v905 = vpop.xlane.xlu0 %904
        %906 = vadd.xlane.f32.xlu0 %v891
        %v907 = vpop.xlane.xlu0 %906
        %v908 = vld [vmem:[#allocation5] sm:$0xff]
        %v909 = vld [vmem:[#allocation5 + $0x8] sm:$0xff]
        %v910 = vld [vmem:[#allocation5 + $0x10] sm:$0xff]
        %v911 = vld [vmem:[#allocation5 + $0x18] sm:$0xff]
        %v912 = vld [vmem:[#allocation5 + $0x20] sm:$0xff]
        %v913 = vld [vmem:[#allocation5 + $0x28] sm:$0xff]
        %v914 = vld [vmem:[#allocation5 + $0x30] sm:$0xff]
        %v915 = vld [vmem:[#allocation5 + $0x38] sm:$0xff]
        %916 = vadd.xlane.f32.xlu0 %v908
        %v917 = vpop.xlane.xlu0 %916
        %918 = vadd.xlane.f32.xlu0 %v909
        %v919 = vpop.xlane.xlu0 %918
        %920 = vadd.xlane.f32.xlu0 %v910
        %v921 = vpop.xlane.xlu0 %920
        %922 = vadd.xlane.f32.xlu0 %v911
        %v923 = vpop.xlane.xlu0 %922
        %924 = vadd.xlane.f32.xlu0 %v912
        %v925 = vpop.xlane.xlu0 %924
        %926 = vadd.xlane.f32.xlu0 %v913
        %v927 = vpop.xlane.xlu0 %926
        %928 = vadd.xlane.f32.xlu0 %v914
        %v929 = vpop.xlane.xlu0 %928
        %930 = vadd.xlane.f32.xlu0 %v915
        %v931 = vpop.xlane.xlu0 %930
        %v932 = vmul.f32 %v869, 2.0
        %v933 = vmul.f32 %v871, 2.0
        %v934 = vmul.f32 %v873, 2.0
        %v935 = vmul.f32 %v875, 2.0
        %v936 = vmul.f32 %v877, 2.0
        %v937 = vmul.f32 %v879, 2.0
        %v938 = vmul.f32 %v881, 2.0
        %v939 = vmul.f32 %v883, 2.0
        %v940 = vadd.f32 %v932, 1e-06
        %v941 = vadd.f32 %v933, 1e-06
        %v942 = vadd.f32 %v934, 1e-06
        %v943 = vadd.f32 %v935, 1e-06
        %v944 = vadd.f32 %v936, 1e-06
        %v945 = vadd.f32 %v937, 1e-06
        %v946 = vadd.f32 %v938, 1e-06
        %v947 = vadd.f32 %v939, 1e-06
        %v948 = vadd.f32 %v893, %v917
        %v949 = vadd.f32 %v895, %v919
        %v950 = vadd.f32 %v897, %v921
        %v951 = vadd.f32 %v899, %v923
        %v952 = vadd.f32 %v901, %v925
        %v953 = vadd.f32 %v903, %v927
        %v954 = vadd.f32 %v905, %v929
        %v955 = vadd.f32 %v907, %v931
        %v956 = vadd.f32 %v948, 1e-06
        %v957 = vadd.f32 %v949, 1e-06
        %v958 = vadd.f32 %v950, 1e-06
        %v959 = vadd.f32 %v951, 1e-06
        %v960 = vadd.f32 %v952, 1e-06
        %v961 = vadd.f32 %v953, 1e-06
        %v962 = vadd.f32 %v954, 1e-06
        %v963 = vadd.f32 %v955, 1e-06
        %v964 = vrcp.pop %v956
        %v965 = vmul.f32 %v940, %v964
        %v966 = vrcp.pop %v957
        %v967 = vmul.f32 %v941, %v966
        %v968 = vrcp.pop %v958
        %v969 = vmul.f32 %v942, %v968
        %v970 = vrcp.pop %v959
        %v971 = vmul.f32 %v943, %v970
        %v972 = vrcp.pop %v960
        %v973 = vmul.f32 %v944, %v972
        %v974 = vrcp.pop %v961
        %v975 = vmul.f32 %v945, %v974
        %v976 = vrcp.pop %v962
        %v977 = vmul.f32 %v946, %v976
        %v978 = vrcp.pop %v963
        %v979 = vmul.f32 %v947, %v978
        %v980 = vsub.f32 1.0, %v965
        %v981 = vsub.f32 1.0, %v967
        %v982 = vsub.f32 1.0, %v969
        %v983 = vsub.f32 1.0, %v971
        %v984 = vsub.f32 1.0, %v973
        %v985 = vsub.f32 1.0, %v975
        %v986 = vsub.f32 1.0, %v977
        %v987 = vsub.f32 1.0, %v979
        %988 = vst.msk [vmem:[%s258] sm:$0xff] %vm851, %v980
        %989 = vst.msk [vmem:[%s258 + $0x8] sm:$0xff] %vm851, %v981
        %990 = vst.msk [vmem:[%s258 + $0x10] sm:$0xff] %vm851, %v982
        %991 = vst.msk [vmem:[%s258 + $0x18] sm:$0xff] %vm851, %v983
        %992 = vst.msk [vmem:[%s258 + $0x20] sm:$0xff] %vm851, %v984
        %993 = vst.msk [vmem:[%s258 + $0x28] sm:$0xff] %vm851, %v985
        %994 = vst.msk [vmem:[%s258 + $0x30] sm:$0xff] %vm851, %v986
        %995 = vst.msk [vmem:[%s258 + $0x38] sm:$0xff] %vm851, %v987
      $region36: #{_compute_losses.3} parent=27 // pred_fallthru
        _
      %s996 = smul.u32 8, %s19
      %p997 = scmp.lt.s32.totalorder %s996, 15
      %s998 = scalar_select %p997, %s996, 15
      %s999 = smul.addr %s998, 8
      %s1000 = scalar_lea.vmem %s2, %s999
      %s1001 = smul.u32 8, %s19
      %p1002 = scmp.lt.s32.totalorder %s1001, 15
      %s1003 = scalar_select %p1002, %s1001, 15
      %s1004 = smul.addr %s1003, 8
      %s1005 = scalar_lea.vmem %s3, %s1004
      // Predicated region
      $region37: #{_compute_losses.3} parent=27 // pred_check
        %p1006 = pneg %p101
      $region38: #{_compute_losses.3} parent=27 // pred_check_branch
        %1008 = sbr.rel (%p1006) target = $region40
      $region39: #{_compute_losses.3} parent=27 // pred_region
        %s1009 = smul.u32 8, %s19
      $region40: #{_compute_losses.3} parent=27 // pred_fallthru
        _
      // Predicated region
      $region41: #{_compute_losses.3} parent=27 // pred_check
        %p1010 = pneg %p127
      $region42: #{_compute_losses.3} parent=27 // pred_check_branch
        %1012 = sbr.rel (%p1010) target = $region44
      $region43: #{_compute_losses.3} parent=27 // pred_region
        %s1013 = smul.u32 8, %s19
      $region44: #{_compute_losses.3} parent=27 // pred_fallthru
        _
    $region28: #{_compute_losses.3} parent=5 // pred_fallthru
      _
    %p1014 = scmp.le.s32.totalorder 2, %s10
    // Predicated region
    $region45: #{_compute_losses.3} parent=5 // pred_check
      %p1015 = pneg %p1014
    $region46: #{_compute_losses.3} parent=5 // pred_check_branch
      %1017 = sbr.rel (%p1015) target = $region48
    $region47: #{_compute_losses.3} parent=5 // pred_region
      %s1018 = ssub.s32 %s10, 2
      // Predicated region
      $region49: #{_compute_losses.3} parent=47 // pred_check
        %p1019 = pneg %p107
      $region50: #{_compute_losses.3} parent=47 // pred_check_branch
        %1021 = sbr.rel (%p1019) target = $region52
      $region51: #{_compute_losses.3} parent=47 // pred_region
        %s1022 = smul.u32 8, %s21
        %p1023 = scmp.lt.s32.totalorder %s1022, 15
        %s1024 = scalar_select %p1023, %s1022, 15
        %s1025 = smul.addr %s1024, 8
        %s1026 = scalar_lea.vmem %s2, %s1025
      $region52: #{_compute_losses.3} parent=47 // pred_fallthru
        _
      // Predicated region
      $region53: #{_compute_losses.3} parent=47 // pred_check
        %p1027 = pneg %p133
      $region54: #{_compute_losses.3} parent=47 // pred_check_branch
        %1029 = sbr.rel (%p1027) target = $region56
      $region55: #{_compute_losses.3} parent=47 // pred_region
        %s1030 = smul.u32 8, %s21
        %p1031 = scmp.lt.s32.totalorder %s1030, 15
        %s1032 = scalar_select %p1031, %s1030, 15
        %s1033 = smul.addr %s1032, 8
        %s1034 = scalar_lea.vmem %s3, %s1033
      $region56: #{_compute_losses.3} parent=47 // pred_fallthru
        _
    $region48: #{_compute_losses.3} parent=5 // pred_fallthru
      _
  $region6: #{_compute_losses.3} parent=0 // loop_footer
    %s14 = sadd.s32 1, %s10
  $region7: #{_compute_losses.3} parent=0 // loop_footer_branch
    %9 = sbr.rel target = $region3
  $region8: #{_compute_losses.3} parent=0 // loop_exit
    _

</llo_original>
